<compile_context>
chip_gen: v6e
topology: v6e:2x2x1
jax: 0.10.0
libtpu: 0.0.40
codegen_flags: <defaults>
</compile_context>

<pallas_src>
import functools

import jax
import jax.numpy as jnp
from jax.experimental import pallas as pl
from jax.experimental.pallas import tpu as pltpu


C_PAD = 128  # lane-dense channel padding (multiple of the 128-wide lane axis)


def _round_up(x, m):
    return ((x + m - 1) // m) * m


# ---- fused kernel ------------------------------------------------------------

def _fused_autoencoder_kernel(x_ref, w_ref, b_ref, enc_ref, dec_ref,
                              buf0, buf1, *, T, relu_flags, enc_layer):
    # x_ref:   (1, T, C_PAD)        channel-padded input sequence (one batch)
    # w_ref:   (L, 3*C_PAD, C_PAD)  im2col weights for all layers (VMEM resident)
    # b_ref:   (L, 1, C_PAD)        biases for all layers
    # enc_ref: (1, T, C_PAD)        encoder output (padded channels)
    # dec_ref: (1, T, C_PAD)        decoder output (padded channels)
    # buf0/1:  (T_halo, C_PAD)      ping-pong activation buffers; rows 0 and T+1
    #                               are the zero halo (never written by layers).
    n_layers = len(relu_flags)

    # Only rows 0 and T+1 of each buffer are ever read as halo; zero exactly
    # those, every grid step (correct even when the batch grid axis is split
    # across TensorCores, and far cheaper than zeroing the whole buffers).
    zero_row = jnp.zeros((1, C_PAD), jnp.float32)
    buf0[pl.ds(0, 1), :] = zero_row
    buf0[pl.ds(T + 1, 1), :] = zero_row
    buf1[pl.ds(0, 1), :] = zero_row
    buf1[pl.ds(T + 1, 1), :] = zero_row

    # Load the channel-padded input into buf0's interior rows [1, T].
    buf0[pl.ds(1, T), :] = x_ref[0]

    bufs = (buf0, buf1)
    src = 0
    for i in range(n_layers):
        inbuf = bufs[src]
        # im2col: row t is [x[t-1] | x[t] | x[t+1]]  ->  (T, 3*C_PAD); a single
        # MXU matmul per layer (K = 3*C_PAD) instead of three short ones.
        xw = jnp.concatenate(
            [inbuf[pl.ds(0, T), :],
             inbuf[pl.ds(1, T), :],
             inbuf[pl.ds(2, T), :]],
            axis=-1)
        y = jnp.dot(xw, w_ref[i], preferred_element_type=jnp.float32)
        y = y + b_ref[i]
        if relu_flags[i]:
            y = jnp.maximum(y, 0.0)
        if i == enc_layer:
            enc_ref[0] = y.astype(enc_ref.dtype)
        if i == n_layers - 1:
            dec_ref[0] = y.astype(dec_ref.dtype)
        else:
            bufs[1 - src][pl.ds(1, T), :] = y
            src = 1 - src


# ---- parameter construction (deterministic, synthetic) ----------------------

def _conv1d_to_w3(w_oik):
    """PyTorch Conv1d weight (Cout, Cin, K=3) -> (3, Cin, Cout):
    y[t] = sum_k x[t-1+k] @ w3[k]."""
    return jnp.transpose(w_oik, (2, 1, 0))


def _convT1d_to_w3(w_iok):
    """PyTorch ConvTranspose1d weight (Cin, Cout, K=3), stride=1, pad=1 ->
    (3, Cin, Cout): y[t] = x[t-1]@W[:,:,2] + x[t]@W[:,:,1] + x[t+1]@W[:,:,0]."""
    return jnp.transpose(w_iok, (2, 0, 1))[::-1]


def _pack_layer(w3, bias):
    """(3, Cin, Cout), (Cout,) -> zero-padded im2col (3*C_PAD, C_PAD), (1, C_PAD).
    Zero padding (not garbage) keeps padded lanes at exactly 0 through every layer."""
    _, cin, cout = w3.shape
    w3p = jnp.zeros((3, C_PAD, C_PAD), jnp.float32).at[:, :cin, :cout].set(w3)
    bp = jnp.zeros((1, C_PAD), jnp.float32).at[0, :cout].set(bias)
    return w3p.reshape(3 * C_PAD, C_PAD), bp


def make_params(input_dims, output_dims, hidden_dims, depth, key):
    decoder_dims = 6 * output_dims
    ws, bs, relu_flags = [], [], []
    w3_list, b_list = [], []  # unpadded, for the pure-JAX reference

    def add_layer(w3, b, relu):
        wp, bp = _pack_layer(w3, b)
        ws.append(wp); bs.append(bp); relu_flags.append(relu)
        w3_list.append(w3); b_list.append(b)

    # Stand-in Encoder: `depth` same-padded Conv1d layers (+ReLU except last),
    # input_dims -> hidden_dims -> ... -> 6*output_dims.
    chans = [input_dims] + [hidden_dims] * (depth - 1) + [decoder_dims]
    for i in range(depth):
        cin, cout = chans[i], chans[i + 1]
        key, kw, kb = jax.random.split(key, 3)
        w = 0.1 * jax.random.normal(kw, (cout, cin, 3), jnp.float32)
        b = 0.1 * jax.random.normal(kb, (cout,), jnp.float32)
        add_layer(_conv1d_to_w3(w), b, relu=i < depth - 1)

    # Decoder: ConvTranspose1d(decoder_dims, decoder_dims//2) -> ReLU ->
    #          ConvTranspose1d(decoder_dims//2, input_dims)
    key, kw1, kb1, kw2, kb2 = jax.random.split(key, 5)
    w1 = 0.1 * jax.random.normal(kw1, (decoder_dims, decoder_dims // 2, 3), jnp.float32)
    b1 = 0.1 * jax.random.normal(kb1, (decoder_dims // 2,), jnp.float32)
    w2 = 0.1 * jax.random.normal(kw2, (decoder_dims // 2, input_dims, 3), jnp.float32)
    b2 = 0.1 * jax.random.normal(kb2, (input_dims,), jnp.float32)
    add_layer(_convT1d_to_w3(w1), b1, relu=True)
    add_layer(_convT1d_to_w3(w2), b2, relu=False)

    return {
        "W": jnp.stack(ws),               # (L, 3*C_PAD, C_PAD)
        "B": jnp.stack(bs),               # (L, 1, C_PAD)
        "relu_flags": tuple(relu_flags),  # static
        "enc_layer": depth - 1,           # static: last encoder layer index
        "enc_dims": decoder_dims,         # true encoder channel count
        "w3_list": w3_list,               # reference-only (unpadded)
        "b_list": b_list,                 # reference-only (unpadded)
    }


# ---- forward -----------------------------------------------------------------

def iahed_autoencoder_forward(x, params):
    """x: (B, T, input_dims) float32. Returns (encoded, decoded):
    encoded: (B, T, 6*output_dims), decoded: (B, T, input_dims)."""
    B, T, input_dims = x.shape
    W_all, B_all = params["W"], params["B"]
    L = W_all.shape[0]
    T_halo = _round_up(T + 2, 8)

    # Channel-pad the input to 128 lanes (zero pad; padded lanes stay zero
    # through every layer because padded weights/biases are zero).
    x_p = jnp.pad(x, ((0, 0), (0, 0), (0, C_PAD - input_dims)))

    kernel = functools.partial(
        _fused_autoencoder_kernel, T=T,
        relu_flags=params["relu_flags"], enc_layer=params["enc_layer"])

    flops = 2 * B * T * (3 * C_PAD) * C_PAD * L
    bytes_accessed = (x_p.size + W_all.size + B_all.size + 2 * B * T * C_PAD) * 4

    enc_pad, dec_pad = pl.pallas_call(
        kernel,
        out_shape=(jax.ShapeDtypeStruct((B, T, C_PAD), jnp.float32),
                   jax.ShapeDtypeStruct((B, T, C_PAD), jnp.float32)),
        grid_spec=pltpu.PrefetchScalarGridSpec(
            num_scalar_prefetch=0,
            grid=(B,),
            in_specs=[
                pl.BlockSpec((1, T, C_PAD), lambda b: (b, 0, 0)),
                pl.BlockSpec((L, 3 * C_PAD, C_PAD), lambda b: (0, 0, 0)),
                pl.BlockSpec((L, 1, C_PAD), lambda b: (0, 0, 0)),
            ],
            out_specs=[
                pl.BlockSpec((1, T, C_PAD), lambda b: (b, 0, 0)),
                pl.BlockSpec((1, T, C_PAD), lambda b: (b, 0, 0)),
            ],
            scratch_shapes=[
                pltpu.VMEM((T_halo, C_PAD), jnp.float32),
                pltpu.VMEM((T_halo, C_PAD), jnp.float32),
            ],
        ),
        compiler_params=pltpu.CompilerParams(
            dimension_semantics=("parallel",)),  # batch split across TCs on v7x
        cost_estimate=pl.CostEstimate(
            flops=flops, transcendentals=0, bytes_accessed=bytes_accessed),
    )(x_p, W_all, B_all)

    encoded = enc_pad[..., :params["enc_dims"]]
    decoded = dec_pad[..., :input_dims]
    return encoded, decoded


# ---- pure-JAX reference (same weight convention: y[t] = sum_k x[t-1+k] @ w3[k]) --

def reference_forward(x, params):
    h = x
    enc = None
    for i, (w3, b, relu) in enumerate(
            zip(params["w3_list"], params["b_list"], params["relu_flags"])):
        hp = jnp.pad(h, ((0, 0), (1, 1), (0, 0)))
        y = (jnp.einsum("btc,co->bto", hp[:, :-2], w3[0]) +
             jnp.einsum("btc,co->bto", hp[:, 1:-1], w3[1]) +
             jnp.einsum("btc,co->bto", hp[:, 2:], w3[2]) + b)
        if relu:
            y = jnp.maximum(y, 0.0)
        if i == params["enc_layer"]:
            enc = y
        h = y
    return enc, h


if __name__ == "__main__":
    B, T = 2, 64
    input_dims, output_dims, hidden_dims, depth = 4, 2, 16, 3

    key = jax.random.PRNGKey(0)
    key, kx, kp = jax.random.split(key, 3)
    x = jax.random.normal(kx, (B, T, input_dims), jnp.float32)
    params = make_params(input_dims, output_dims, hidden_dims, depth, kp)

    encoded, decoded = iahed_autoencoder_forward(x, params)
    jax.block_until_ready((encoded, decoded))

    assert encoded.shape == (B, T, 6 * output_dims), encoded.shape
    assert decoded.shape == (B, T, input_dims), decoded.shape
    assert bool(jnp.all(jnp.isfinite(encoded))) and bool(jnp.all(jnp.isfinite(decoded)))

    enc_ref, dec_ref = reference_forward(x, params)
    assert bool(jnp.allclose(encoded, enc_ref, atol=2e-3, rtol=2e-3)), (
        float(jnp.max(jnp.abs(encoded - enc_ref))))
    assert bool(jnp.allclose(decoded, dec_ref, atol=2e-3, rtol=2e-3)), (
        float(jnp.max(jnp.abs(decoded - dec_ref))))

    print("KERNEL_OK")
</pallas_src>

<mosaic_0001>
module attributes {stable_mosaic.version = 11 : i64} {
  func.func @_fused_autoencoder_kernel(%arg0: i32, %arg1: memref<1x64x128xf32, #tpu.memory_space<vmem>>, %arg2: memref<5x384x128xf32, #tpu.memory_space<vmem>>, %arg3: memref<5x1x128xf32, #tpu.memory_space<vmem>>, %arg4: memref<1x64x128xf32, #tpu.memory_space<vmem>>, %arg5: memref<1x64x128xf32, #tpu.memory_space<vmem>>, %arg6: memref<72x128xf32, #tpu.memory_space<vmem>>, %arg7: memref<72x128xf32, #tpu.memory_space<vmem>>) attributes {dimension_semantics = [#tpu.dimension_semantics<parallel>], iteration_bounds = array<i64: 2>, scalar_prefetch = 0 : i64, scratch_operands = 2 : i64, tpu.core_type = #tpu.core_type<tc>, window_params = [{transform_indices = @transform_0, window_bounds = array<i64: 1, 64, 128>}, {pipeline_mode = #tpu.pipeline_mode<synchronous>, transform_indices = @transform_1, window_bounds = array<i64: 5, 384, 128>}, {pipeline_mode = #tpu.pipeline_mode<synchronous>, transform_indices = @transform_2, window_bounds = array<i64: 5, 1, 128>}, {transform_indices = @transform_3, window_bounds = array<i64: 1, 64, 128>}, {transform_indices = @transform_4, window_bounds = array<i64: 1, 64, 128>}]} {
    %cst = arith.constant 0.000000e+00 : f32
    %0 = vector.broadcast %cst : f32 to vector<1x128xf32>
    %c0 = arith.constant 0 : index
    %c0_0 = arith.constant 0 : index
    %1 = vector.load %arg6[%c0, %c0_0] : memref<72x128xf32, #tpu.memory_space<vmem>>, vector<1x128xf32>
    tpu.vector_store %arg6[%c0, %c0_0], %0 {strides = array<i32>} : memref<72x128xf32, #tpu.memory_space<vmem>>, vector<1x128xf32>,
    %c65 = arith.constant 65 : index
    %c0_1 = arith.constant 0 : index
    %2 = vector.load %arg6[%c65, %c0_1] : memref<72x128xf32, #tpu.memory_space<vmem>>, vector<1x128xf32>
    tpu.vector_store %arg6[%c65, %c0_1], %0 {strides = array<i32>} : memref<72x128xf32, #tpu.memory_space<vmem>>, vector<1x128xf32>,
    %c0_2 = arith.constant 0 : index
    %c0_3 = arith.constant 0 : index
    %3 = vector.load %arg7[%c0_2, %c0_3] : memref<72x128xf32, #tpu.memory_space<vmem>>, vector<1x128xf32>
    tpu.vector_store %arg7[%c0_2, %c0_3], %0 {strides = array<i32>} : memref<72x128xf32, #tpu.memory_space<vmem>>, vector<1x128xf32>,
    %c65_4 = arith.constant 65 : index
    %c0_5 = arith.constant 0 : index
    %4 = vector.load %arg7[%c65_4, %c0_5] : memref<72x128xf32, #tpu.memory_space<vmem>>, vector<1x128xf32>
    tpu.vector_store %arg7[%c65_4, %c0_5], %0 {strides = array<i32>} : memref<72x128xf32, #tpu.memory_space<vmem>>, vector<1x128xf32>,
    %c0_6 = arith.constant 0 : index
    %c0_7 = arith.constant 0 : index
    %c0_8 = arith.constant 0 : index
    %5 = vector.load %arg1[%c0_6, %c0_7, %c0_8] : memref<1x64x128xf32, #tpu.memory_space<vmem>>, vector<1x64x128xf32>
    %6 = vector.shape_cast %5 : vector<1x64x128xf32> to vector<64x128xf32>
    %c1 = arith.constant 1 : index
    %c0_9 = arith.constant 0 : index
    %7 = vector.load %arg6[%c1, %c0_9] : memref<72x128xf32, #tpu.memory_space<vmem>>, vector<64x128xf32>
    tpu.vector_store %arg6[%c1, %c0_9], %6 {strides = array<i32>} : memref<72x128xf32, #tpu.memory_space<vmem>>, vector<64x128xf32>,
    %c0_10 = arith.constant 0 : index
    %c0_11 = arith.constant 0 : index
    %8 = vector.load %arg6[%c0_10, %c0_11] : memref<72x128xf32, #tpu.memory_space<vmem>>, vector<64x128xf32>
    %c1_12 = arith.constant 1 : index
    %c0_13 = arith.constant 0 : index
    %9 = vector.load %arg6[%c1_12, %c0_13] : memref<72x128xf32, #tpu.memory_space<vmem>>, vector<64x128xf32>
    %c2 = arith.constant 2 : index
    %c0_14 = arith.constant 0 : index
    %10 = vector.load %arg6[%c2, %c0_14] : memref<72x128xf32, #tpu.memory_space<vmem>>, vector<64x128xf32>
    %11 = tpu.concatenate %8, %9, %10 in 1 : vector<64x128xf32>, vector<64x128xf32>, vector<64x128xf32> -> vector<64x384xf32>
    %c0_15 = arith.constant 0 : index
    %c0_16 = arith.constant 0 : index
    %c0_17 = arith.constant 0 : index
    %12 = vector.load %arg2[%c0_15, %c0_16, %c0_17] : memref<5x384x128xf32, #tpu.memory_space<vmem>>, vector<1x384x128xf32>
    %13 = vector.shape_cast %12 : vector<1x384x128xf32> to vector<384x128xf32>
    %cst_18 = arith.constant dense<0.000000e+00> : vector<64x128xf32>
    %14 = tpu.matmul %11, %13, %cst_18 {dimension_numbers = #tpu.dot_dimension_numbers<[1], [0], [0], [1], [0, 0, 1, 1], [], []>} : vector<64x384xf32>, vector<384x128xf32>, vector<64x128xf32> -> vector<64x128xf32>
    %c0_19 = arith.constant 0 : index
    %c0_20 = arith.constant 0 : index
    %c0_21 = arith.constant 0 : index
    %15 = vector.load %arg3[%c0_19, %c0_20, %c0_21] : memref<5x1x128xf32, #tpu.memory_space<vmem>>, vector<1x1x128xf32>
    %16 = vector.shape_cast %15 : vector<1x1x128xf32> to vector<1x128xf32>
    %17 = vector.broadcast %16 : vector<1x128xf32> to vector<64x128xf32>
    %18 = arith.addf %14, %17 : vector<64x128xf32>
    %cst_22 = arith.constant 0.000000e+00 : f32
    %19 = vector.broadcast %cst_22 : f32 to vector<64x128xf32>
    %20 = arith.maximumf %18, %19 : vector<64x128xf32>
    %c1_23 = arith.constant 1 : index
    %c0_24 = arith.constant 0 : index
    %21 = vector.load %arg7[%c1_23, %c0_24] : memref<72x128xf32, #tpu.memory_space<vmem>>, vector<64x128xf32>
    tpu.vector_store %arg7[%c1_23, %c0_24], %20 {strides = array<i32>} : memref<72x128xf32, #tpu.memory_space<vmem>>, vector<64x128xf32>,
    %c0_25 = arith.constant 0 : index
    %c0_26 = arith.constant 0 : index
    %22 = vector.load %arg7[%c0_25, %c0_26] : memref<72x128xf32, #tpu.memory_space<vmem>>, vector<64x128xf32>
    %c1_27 = arith.constant 1 : index
    %c0_28 = arith.constant 0 : index
    %23 = vector.load %arg7[%c1_27, %c0_28] : memref<72x128xf32, #tpu.memory_space<vmem>>, vector<64x128xf32>
    %c2_29 = arith.constant 2 : index
    %c0_30 = arith.constant 0 : index
    %24 = vector.load %arg7[%c2_29, %c0_30] : memref<72x128xf32, #tpu.memory_space<vmem>>, vector<64x128xf32>
    %25 = tpu.concatenate %22, %23, %24 in 1 : vector<64x128xf32>, vector<64x128xf32>, vector<64x128xf32> -> vector<64x384xf32>
    %c1_31 = arith.constant 1 : index
    %c0_32 = arith.constant 0 : index
    %c0_33 = arith.constant 0 : index
    %26 = vector.load %arg2[%c1_31, %c0_32, %c0_33] : memref<5x384x128xf32, #tpu.memory_space<vmem>>, vector<1x384x128xf32>
    %27 = vector.shape_cast %26 : vector<1x384x128xf32> to vector<384x128xf32>
    %cst_34 = arith.constant dense<0.000000e+00> : vector<64x128xf32>
    %28 = tpu.matmul %25, %27, %cst_34 {dimension_numbers = #tpu.dot_dimension_numbers<[1], [0], [0], [1], [0, 0, 1, 1], [], []>} : vector<64x384xf32>, vector<384x128xf32>, vector<64x128xf32> -> vector<64x128xf32>
    %c1_35 = arith.constant 1 : index
    %c0_36 = arith.constant 0 : index
    %c0_37 = arith.constant 0 : index
    %29 = vector.load %arg3[%c1_35, %c0_36, %c0_37] : memref<5x1x128xf32, #tpu.memory_space<vmem>>, vector<1x1x128xf32>
    %30 = vector.shape_cast %29 : vector<1x1x128xf32> to vector<1x128xf32>
    %31 = vector.broadcast %30 : vector<1x128xf32> to vector<64x128xf32>
    %32 = arith.addf %28, %31 : vector<64x128xf32>
    %cst_38 = arith.constant 0.000000e+00 : f32
    %33 = vector.broadcast %cst_38 : f32 to vector<64x128xf32>
    %34 = arith.maximumf %32, %33 : vector<64x128xf32>
    %c1_39 = arith.constant 1 : index
    %c0_40 = arith.constant 0 : index
    %35 = vector.load %arg6[%c1_39, %c0_40] : memref<72x128xf32, #tpu.memory_space<vmem>>, vector<64x128xf32>
    tpu.vector_store %arg6[%c1_39, %c0_40], %34 {strides = array<i32>} : memref<72x128xf32, #tpu.memory_space<vmem>>, vector<64x128xf32>,
    %c0_41 = arith.constant 0 : index
    %c0_42 = arith.constant 0 : index
    %36 = vector.load %arg6[%c0_41, %c0_42] : memref<72x128xf32, #tpu.memory_space<vmem>>, vector<64x128xf32>
    %c1_43 = arith.constant 1 : index
    %c0_44 = arith.constant 0 : index
    %37 = vector.load %arg6[%c1_43, %c0_44] : memref<72x128xf32, #tpu.memory_space<vmem>>, vector<64x128xf32>
    %c2_45 = arith.constant 2 : index
    %c0_46 = arith.constant 0 : index
    %38 = vector.load %arg6[%c2_45, %c0_46] : memref<72x128xf32, #tpu.memory_space<vmem>>, vector<64x128xf32>
    %39 = tpu.concatenate %36, %37, %38 in 1 : vector<64x128xf32>, vector<64x128xf32>, vector<64x128xf32> -> vector<64x384xf32>
    %c2_47 = arith.constant 2 : index
    %c0_48 = arith.constant 0 : index
    %c0_49 = arith.constant 0 : index
    %40 = vector.load %arg2[%c2_47, %c0_48, %c0_49] : memref<5x384x128xf32, #tpu.memory_space<vmem>>, vector<1x384x128xf32>
    %41 = vector.shape_cast %40 : vector<1x384x128xf32> to vector<384x128xf32>
    %cst_50 = arith.constant dense<0.000000e+00> : vector<64x128xf32>
    %42 = tpu.matmul %39, %41, %cst_50 {dimension_numbers = #tpu.dot_dimension_numbers<[1], [0], [0], [1], [0, 0, 1, 1], [], []>} : vector<64x384xf32>, vector<384x128xf32>, vector<64x128xf32> -> vector<64x128xf32>
    %c2_51 = arith.constant 2 : index
    %c0_52 = arith.constant 0 : index
    %c0_53 = arith.constant 0 : index
    %43 = vector.load %arg3[%c2_51, %c0_52, %c0_53] : memref<5x1x128xf32, #tpu.memory_space<vmem>>, vector<1x1x128xf32>
    %44 = vector.shape_cast %43 : vector<1x1x128xf32> to vector<1x128xf32>
    %45 = vector.broadcast %44 : vector<1x128xf32> to vector<64x128xf32>
    %46 = arith.addf %42, %45 : vector<64x128xf32>
    %c0_54 = arith.constant 0 : index
    %c0_55 = arith.constant 0 : index
    %c0_56 = arith.constant 0 : index
    %47 = vector.load %arg4[%c0_54, %c0_55, %c0_56] : memref<1x64x128xf32, #tpu.memory_space<vmem>>, vector<1x64x128xf32>
    %48 = vector.shape_cast %47 : vector<1x64x128xf32> to vector<64x128xf32>
    %49 = vector.shape_cast %46 : vector<64x128xf32> to vector<1x64x128xf32>
    tpu.vector_store %arg4[%c0_54, %c0_55, %c0_56], %49 {strides = array<i32>} : memref<1x64x128xf32, #tpu.memory_space<vmem>>, vector<1x64x128xf32>,
    %c1_57 = arith.constant 1 : index
    %c0_58 = arith.constant 0 : index
    %50 = vector.load %arg7[%c1_57, %c0_58] : memref<72x128xf32, #tpu.memory_space<vmem>>, vector<64x128xf32>
    tpu.vector_store %arg7[%c1_57, %c0_58], %46 {strides = array<i32>} : memref<72x128xf32, #tpu.memory_space<vmem>>, vector<64x128xf32>,
    %c0_59 = arith.constant 0 : index
    %c0_60 = arith.constant 0 : index
    %51 = vector.load %arg7[%c0_59, %c0_60] : memref<72x128xf32, #tpu.memory_space<vmem>>, vector<64x128xf32>
    %c1_61 = arith.constant 1 : index
    %c0_62 = arith.constant 0 : index
    %52 = vector.load %arg7[%c1_61, %c0_62] : memref<72x128xf32, #tpu.memory_space<vmem>>, vector<64x128xf32>
    %c2_63 = arith.constant 2 : index
    %c0_64 = arith.constant 0 : index
    %53 = vector.load %arg7[%c2_63, %c0_64] : memref<72x128xf32, #tpu.memory_space<vmem>>, vector<64x128xf32>
    %54 = tpu.concatenate %51, %52, %53 in 1 : vector<64x128xf32>, vector<64x128xf32>, vector<64x128xf32> -> vector<64x384xf32>
    %c3 = arith.constant 3 : index
    %c0_65 = arith.constant 0 : index
    %c0_66 = arith.constant 0 : index
    %55 = vector.load %arg2[%c3, %c0_65, %c0_66] : memref<5x384x128xf32, #tpu.memory_space<vmem>>, vector<1x384x128xf32>
    %56 = vector.shape_cast %55 : vector<1x384x128xf32> to vector<384x128xf32>
    %cst_67 = arith.constant dense<0.000000e+00> : vector<64x128xf32>
    %57 = tpu.matmul %54, %56, %cst_67 {dimension_numbers = #tpu.dot_dimension_numbers<[1], [0], [0], [1], [0, 0, 1, 1], [], []>} : vector<64x384xf32>, vector<384x128xf32>, vector<64x128xf32> -> vector<64x128xf32>
    %c3_68 = arith.constant 3 : index
    %c0_69 = arith.constant 0 : index
    %c0_70 = arith.constant 0 : index
    %58 = vector.load %arg3[%c3_68, %c0_69, %c0_70] : memref<5x1x128xf32, #tpu.memory_space<vmem>>, vector<1x1x128xf32>
    %59 = vector.shape_cast %58 : vector<1x1x128xf32> to vector<1x128xf32>
    %60 = vector.broadcast %59 : vector<1x128xf32> to vector<64x128xf32>
    %61 = arith.addf %57, %60 : vector<64x128xf32>
    %cst_71 = arith.constant 0.000000e+00 : f32
    %62 = vector.broadcast %cst_71 : f32 to vector<64x128xf32>
    %63 = arith.maximumf %61, %62 : vector<64x128xf32>
    %c1_72 = arith.constant 1 : index
    %c0_73 = arith.constant 0 : index
    %64 = vector.load %arg6[%c1_72, %c0_73] : memref<72x128xf32, #tpu.memory_space<vmem>>, vector<64x128xf32>
    tpu.vector_store %arg6[%c1_72, %c0_73], %63 {strides = array<i32>} : memref<72x128xf32, #tpu.memory_space<vmem>>, vector<64x128xf32>,
    %c0_74 = arith.constant 0 : index
    %c0_75 = arith.constant 0 : index
    %65 = vector.load %arg6[%c0_74, %c0_75] : memref<72x128xf32, #tpu.memory_space<vmem>>, vector<64x128xf32>
    %c1_76 = arith.constant 1 : index
    %c0_77 = arith.constant 0 : index
    %66 = vector.load %arg6[%c1_76, %c0_77] : memref<72x128xf32, #tpu.memory_space<vmem>>, vector<64x128xf32>
    %c2_78 = arith.constant 2 : index
    %c0_79 = arith.constant 0 : index
    %67 = vector.load %arg6[%c2_78, %c0_79] : memref<72x128xf32, #tpu.memory_space<vmem>>, vector<64x128xf32>
    %68 = tpu.concatenate %65, %66, %67 in 1 : vector<64x128xf32>, vector<64x128xf32>, vector<64x128xf32> -> vector<64x384xf32>
    %c4 = arith.constant 4 : index
    %c0_80 = arith.constant 0 : index
    %c0_81 = arith.constant 0 : index
    %69 = vector.load %arg2[%c4, %c0_80, %c0_81] : memref<5x384x128xf32, #tpu.memory_space<vmem>>, vector<1x384x128xf32>
    %70 = vector.shape_cast %69 : vector<1x384x128xf32> to vector<384x128xf32>
    %cst_82 = arith.constant dense<0.000000e+00> : vector<64x128xf32>
    %71 = tpu.matmul %68, %70, %cst_82 {dimension_numbers = #tpu.dot_dimension_numbers<[1], [0], [0], [1], [0, 0, 1, 1], [], []>} : vector<64x384xf32>, vector<384x128xf32>, vector<64x128xf32> -> vector<64x128xf32>
    %c4_83 = arith.constant 4 : index
    %c0_84 = arith.constant 0 : index
    %c0_85 = arith.constant 0 : index
    %72 = vector.load %arg3[%c4_83, %c0_84, %c0_85] : memref<5x1x128xf32, #tpu.memory_space<vmem>>, vector<1x1x128xf32>
    %73 = vector.shape_cast %72 : vector<1x1x128xf32> to vector<1x128xf32>
    %74 = vector.broadcast %73 : vector<1x128xf32> to vector<64x128xf32>
    %75 = arith.addf %71, %74 : vector<64x128xf32>
    %c0_86 = arith.constant 0 : index
    %c0_87 = arith.constant 0 : index
    %c0_88 = arith.constant 0 : index
    %76 = vector.load %arg5[%c0_86, %c0_87, %c0_88] : memref<1x64x128xf32, #tpu.memory_space<vmem>>, vector<1x64x128xf32>
    %77 = vector.shape_cast %76 : vector<1x64x128xf32> to vector<64x128xf32>
    %78 = vector.shape_cast %75 : vector<64x128xf32> to vector<1x64x128xf32>
    tpu.vector_store %arg5[%c0_86, %c0_87, %c0_88], %78 {strides = array<i32>} : memref<1x64x128xf32, #tpu.memory_space<vmem>>, vector<1x64x128xf32>,
    return
  }
  func.func @transform_0(%arg0: i32) -> (i32, i32, i32) {
    %c0_i32 = arith.constant 0 : i32
    %c0_i32_0 = arith.constant 0 : i32
    %c0_i32_1 = arith.constant 0 : i32
    return %arg0, %c0_i32, %c0_i32_0 : i32, i32, i32
  }
  func.func @transform_1(%arg0: i32) -> (i32, i32, i32) {
    %c0_i32 = arith.constant 0 : i32
    %c0_i32_0 = arith.constant 0 : i32
    %c0_i32_1 = arith.constant 0 : i32
    %c0_i32_2 = arith.constant 0 : i32
    return %c0_i32, %c0_i32_0, %c0_i32_1 : i32, i32, i32
  }
  func.func @transform_2(%arg0: i32) -> (i32, i32, i32) {
    %c0_i32 = arith.constant 0 : i32
    %c0_i32_0 = arith.constant 0 : i32
    %c0_i32_1 = arith.constant 0 : i32
    %c0_i32_2 = arith.constant 0 : i32
    return %c0_i32, %c0_i32_0, %c0_i32_1 : i32, i32, i32
  }
  func.func @transform_3(%arg0: i32) -> (i32, i32, i32) {
    %c0_i32 = arith.constant 0 : i32
    %c0_i32_0 = arith.constant 0 : i32
    %c0_i32_1 = arith.constant 0 : i32
    return %arg0, %c0_i32, %c0_i32_0 : i32, i32, i32
  }
  func.func @transform_4(%arg0: i32) -> (i32, i32, i32) {
    %c0_i32 = arith.constant 0 : i32
    %c0_i32_0 = arith.constant 0 : i32
    %c0_i32_1 = arith.constant 0 : i32
    return %arg0, %c0_i32, %c0_i32_0 : i32, i32, i32
  }
}

</mosaic_0001>

<llo_original>
// kernel: tpu_custom_call.1
$region0: #{tpu_custom_call.1}
  #allocation0 [shape = 'u32[]', space=smem, size = 0x4, offset = 0x4, fixed_abs, tag = 'smem constant byte address 0x4 - core index']
  #allocation1 [shape = 'u32[144,128]{1,0:T(1,128)}', space=vmem, size = 0x12000, scoped, tag = 'internal scratch']
  #allocation2 [shape = 'f32[72,128]{1,0:T(8,128)}', space=vmem, size = 0x9000, scoped, tag = 'scratch operand']
  #allocation3 [shape = 'f32[72,128]{1,0:T(8,128)}', space=vmem, size = 0x9000, scoped, tag = 'scratch operand']
  %s0 = inlined_call_operand.hbm [shape: f32[2,64,128], index: 0, kind: input, shape index: {}]
  %s1 = inlined_call_operand.hbm [shape: f32[5,384,128], index: 1, kind: input, shape index: {}]
  %s2 = inlined_call_operand.hbm [shape: f32[5,1,128], index: 2, kind: input, shape index: {}]
  %s3 = inlined_call_operand.hbm [shape: f32[2,64,128], index: 3, kind: output, shape index: {0}]
  %s4 = inlined_call_operand.hbm [shape: f32[2,64,128], index: 4, kind: output, shape index: {1}]
  %5 = xla_tuple %s3, %s4
  %s6 = sld [smem:[#allocation0]]
  $region65: #{tpu_custom_call.1} parent=0
    _
  %s8 = ssub.s32 1, %s6
  %s9 = scalar_select 0, %s8, %s6
  $region1: #{tpu_custom_call.1} parent=0
    #allocation4 [shape = 'u8[65536]{0}', space=vmem, size = 0x10000, scoped, tag = 'input window, operand 0']
    #allocation5 [shape = 's32[2]{0}', space=sflag, size = 0x8, scoped, tag = 'scoped memory for tpu_custom_call.1']
    #allocation6 [shape = 's32[2]{0}', space=sflag, size = 0x8, scoped, tag = 'scoped memory for tpu_custom_call.1']
    #allocation7 [shape = 'u8[983040]{0}', space=vmem, size = 0xf0000, scoped, tag = 'input window, operand 1, single buffered']
    #allocation8 [shape = 's32[1]{0}', space=sflag, size = 0x4, scoped, tag = 'scoped memory for tpu_custom_call.1']
    #allocation9 [shape = 'u8[2560]{0}', space=vmem, size = 0xc00, scoped, tag = 'input window, operand 2, single buffered']
    #allocation10 [shape = 'u8[65536]{0}', space=vmem, size = 0x10000, scoped, tag = 'output window, operand 0']
    #allocation11 [shape = 'u8[65536]{0}', space=vmem, size = 0x10000, scoped, tag = 'output window, operand 1']
    #allocation12 [shape = 's32[2]{0}', space=sflag, size = 0x8, scoped, tag = 'scoped memory for tpu_custom_call.1']
    %10 = vsyncpa [#allocation5], 0
    %s11 = scalar_lea.sflag [#allocation5], 1
    %12 = vsyncpa %s11, 0
    %13 = vsyncpa [#allocation8], 0
    %14 = vsyncpa [#allocation6], 0
    %s15 = scalar_lea.sflag [#allocation6], 1
    %16 = vsyncpa %s15, 0
    %17 = vsyncpa [#allocation12], 0
    %s18 = scalar_lea.sflag [#allocation12], 1
    %19 = vsyncpa %s18, 0
    loop: start=0, step=1, limit=4
    $region2: #{tpu_custom_call.1} parent=1 // loop_pre_header
      _
    $region3: #{tpu_custom_call.1} parent=1 // loop_header
      %s21 = sphi 0, %s25
      %p22 = scmp.ge.s32.totalorder %s21, 4
      %s31 = sphi 0, %s33
      %s34 = sphi 0, %s31
      %s35 = sphi 0, %s34
      %s51 = sphi 0, %s35
      %s55 = sphi 0, %s55
      %s57 = sphi 0, %s55
      %s58 = sphi 0, %s57
      %s72 = sphi 0, %s58
      %s76 = sphi 0, %s76
      %s78 = sphi 0, %s76
      %s79 = sphi 0, %s78
      %s93 = sphi 0, %s79
      %s99 = sphi 0, %s101
      %s102 = sphi 0, %s99
      %s103 = sphi 0, %s102
      %s119 = sphi 0, %s103
      %s125 = sphi 0, %s127
      %s128 = sphi 0, %s125
      %s129 = sphi 0, %s128
      %s145 = sphi 0, %s129
    $region4: #{tpu_custom_call.1} parent=1 // loop_header_branch
      %24 = sbr.rel (%p22) target = $region8
    $region5: #{tpu_custom_call.1} parent=1 // loop_body
      %s26 = ssub.s32 %s21, 1
      %s27 = ssub.s32 %s21, 2
      %s28 = sadd.s32 %s21, 1
      %s29 = ssub.s32 %s21, %s28
      %p30 = scmp.eq.s32.totalorder %s29, 0
      %s32 = sadd.s32 %s31, 1
      %s33 = scalar_select %p30, %s31, %s32
      %p36 = pneg %p30
      %p37 = scmp.eq.s32.totalorder %s21, 1
      %p38 = por %p36, %p37
      %p39 = scmp.ne.s32.totalorder %s31, %s34
      %p40 = scmp.eq.s32.totalorder %s21, 0
      %p41 = por %p39, %p40
      %p42 = scmp.ne.s32.totalorder %s31, %s34
      %p43 = scmp.eq.s32.totalorder %s26, 1
      %p44 = por %p42, %p43
      %p45 = scmp.ne.s32.totalorder %s34, %s35
      %p46 = scmp.eq.s32.totalorder %s26, 0
      %p47 = por %p45, %p46
      %p48 = scmp.ne.s32.totalorder %s34, %s35
      %p49 = scmp.eq.s32.totalorder %s27, 1
      %p50 = por %p48, %p49
      %p52 = scmp.ne.s32.totalorder %s35, %s51
      %p53 = scmp.eq.s32.totalorder %s27, 0
      %p54 = por %p52, %p53
      %s56 = sadd.s32 %s55, 1
      %p59 = scmp.eq.s32.totalorder %s21, 1
      %p60 = scmp.ne.s32.totalorder %s55, %s57
      %p61 = scmp.eq.s32.totalorder %s21, 0
      %p62 = por %p60, %p61
      %p63 = scmp.ne.s32.totalorder %s55, %s57
      %p64 = scmp.eq.s32.totalorder %s26, 1
      %p65 = por %p63, %p64
      %p66 = scmp.ne.s32.totalorder %s57, %s58
      %p67 = scmp.eq.s32.totalorder %s26, 0
      %p68 = por %p66, %p67
      %p69 = scmp.ne.s32.totalorder %s57, %s58
      %p70 = scmp.eq.s32.totalorder %s27, 1
      %p71 = por %p69, %p70
      %p73 = scmp.ne.s32.totalorder %s58, %s72
      %p74 = scmp.eq.s32.totalorder %s27, 0
      %p75 = por %p73, %p74
      %s77 = sadd.s32 %s76, 1
      %p80 = scmp.eq.s32.totalorder %s21, 1
      %p81 = scmp.ne.s32.totalorder %s76, %s78
      %p82 = scmp.eq.s32.totalorder %s21, 0
      %p83 = por %p81, %p82
      %p84 = scmp.ne.s32.totalorder %s76, %s78
      %p85 = scmp.eq.s32.totalorder %s26, 1
      %p86 = por %p84, %p85
      %p87 = scmp.ne.s32.totalorder %s78, %s79
      %p88 = scmp.eq.s32.totalorder %s26, 0
      %p89 = por %p87, %p88
      %p90 = scmp.ne.s32.totalorder %s78, %s79
      %p91 = scmp.eq.s32.totalorder %s27, 1
      %p92 = por %p90, %p91
      %p94 = scmp.ne.s32.totalorder %s79, %s93
      %p95 = scmp.eq.s32.totalorder %s27, 0
      %p96 = por %p94, %p95
      %s97 = ssub.s32 %s21, %s28
      %p98 = scmp.eq.s32.totalorder %s97, 0
      %s100 = sadd.s32 %s99, 1
      %s101 = scalar_select %p98, %s99, %s100
      %p104 = pneg %p98
      %p105 = scmp.eq.s32.totalorder %s21, 1
      %p106 = por %p104, %p105
      %p107 = scmp.ne.s32.totalorder %s99, %s102
      %p108 = scmp.eq.s32.totalorder %s21, 0
      %p109 = por %p107, %p108
      %p110 = scmp.ne.s32.totalorder %s99, %s102
      %p111 = scmp.eq.s32.totalorder %s26, 1
      %p112 = por %p110, %p111
      %p113 = scmp.ne.s32.totalorder %s102, %s103
      %p114 = scmp.eq.s32.totalorder %s26, 0
      %p115 = por %p113, %p114
      %p116 = scmp.ne.s32.totalorder %s102, %s103
      %p117 = scmp.eq.s32.totalorder %s27, 1
      %p118 = por %p116, %p117
      %p120 = scmp.ne.s32.totalorder %s103, %s119
      %p121 = scmp.eq.s32.totalorder %s27, 0
      %p122 = por %p120, %p121
      %s123 = ssub.s32 %s21, %s28
      %p124 = scmp.eq.s32.totalorder %s123, 0
      %s126 = sadd.s32 %s125, 1
      %s127 = scalar_select %p124, %s125, %s126
      %p130 = pneg %p124
      %p131 = scmp.eq.s32.totalorder %s21, 1
      %p132 = por %p130, %p131
      %p133 = scmp.ne.s32.totalorder %s125, %s128
      %p134 = scmp.eq.s32.totalorder %s21, 0
      %p135 = por %p133, %p134
      %p136 = scmp.ne.s32.totalorder %s125, %s128
      %p137 = scmp.eq.s32.totalorder %s26, 1
      %p138 = por %p136, %p137
      %p139 = scmp.ne.s32.totalorder %s128, %s129
      %p140 = scmp.eq.s32.totalorder %s26, 0
      %p141 = por %p139, %p140
      %p142 = scmp.ne.s32.totalorder %s128, %s129
      %p143 = scmp.eq.s32.totalorder %s27, 1
      %p144 = por %p142, %p143
      %p146 = scmp.ne.s32.totalorder %s129, %s145
      %p147 = scmp.eq.s32.totalorder %s27, 0
      %p148 = por %p146, %p147
      %p149 = scmp.le.s32.totalorder 1, %s21
      %p150 = scmp.lt.s32.totalorder %s21, 3
      %p151 = pnand %p149, %p150
      %p152 = pneg %p151
      // Predicated region
      $region9: #{tpu_custom_call.1} parent=5 // pred_check
        _
      $region10: #{tpu_custom_call.1} parent=5 // pred_check_branch
        %154 = sbr.rel (%p151) target = $region12
      $region11: #{tpu_custom_call.1} parent=5 // pred_region
        %s155 = ssub.s32 %s21, 1
        // Predicated region
        $region13: #{tpu_custom_call.1} parent=11 // pred_check
          %p156 = pneg %p68
        $region14: #{tpu_custom_call.1} parent=11 // pred_check_branch
          %158 = sbr.rel (%p156) target = $region16
        $region15: #{tpu_custom_call.1} parent=11 // pred_region
          %s160 = ssub.s32 30720, 30720
          %161 = vsyncadd [#allocation8], %s160
          %s162 = sshll.u32 [#allocation7], 4
          %s163 = int_to_ptr.vmem [resolvable:$true] %s162
          %168 = dma.hbm_to_vmem [thread:$0]  %s1, 30720, %s163, [#allocation8], 128, 128, 8
        $region16: #{tpu_custom_call.1} parent=11 // pred_fallthru
          _
        // Predicated region
        $region17: #{tpu_custom_call.1} parent=11 // pred_check
          %p169 = pneg %p89
        $region18: #{tpu_custom_call.1} parent=11 // pred_check_branch
          %171 = sbr.rel (%p169) target = $region20
        $region19: #{tpu_custom_call.1} parent=11 // pred_region
          %s173 = ssub.s32 80, 80
          %174 = vsyncadd [#allocation8], %s173
          %s175 = sshll.u32 [#allocation9], 4
          %s176 = int_to_ptr.vmem [resolvable:$true] %s175
          %181 = dma.hbm_to_vmem [thread:$0]  %s2, 80, %s176, [#allocation8], 16, 16, 1
        $region20: #{tpu_custom_call.1} parent=11 // pred_fallthru
          _
      $region12: #{tpu_custom_call.1} parent=5 // pred_fallthru
        _
      %p182 = scmp.lt.s32.totalorder %s21, 2
      // Predicated region
      $region21: #{tpu_custom_call.1} parent=5 // pred_check
        %p183 = pneg %p182
      $region22: #{tpu_custom_call.1} parent=5 // pred_check_branch
        %185 = sbr.rel (%p183) target = $region24
      $region23: #{tpu_custom_call.1} parent=5 // pred_region
        // Predicated region
        $region25: #{tpu_custom_call.1} parent=23 // pred_check
          %p186 = pneg %p41
        $region26: #{tpu_custom_call.1} parent=23 // pred_check_branch
          %188 = sbr.rel (%p186) target = $region28
        $region27: #{tpu_custom_call.1} parent=23 // pred_region
          %s189 = sand.u32 %s31, 1
          %s190 = scalar_lea.sflag [#allocation5], %s189
          %s191 = sand.u32 %s31, 1
          %s192 = smul.addr %s191, 64
          %s193 = scalar_lea.vmem [#allocation4], %s192
          %s195 = ssub.s32 1024, 1024
          %196 = vsyncadd %s190, %s195
          %s197 = smul.addr %s21, 8
          %s198 = smul.addr %s197, 128
          %s199 = scalar_lea.hbm %s0, %s198
          %s200 = sshll.u32 %s193, 4
          %s201 = int_to_ptr.vmem [resolvable:$true] %s200
          %206 = dma.hbm_to_vmem [thread:$0]  %s199, 1024, %s201, %s190, 128, 128, 8
        $region28: #{tpu_custom_call.1} parent=23 // pred_fallthru
          _
      $region24: #{tpu_custom_call.1} parent=5 // pred_fallthru
        _
      %p207 = scmp.le.s32.totalorder 1, %s21
      %p208 = scmp.lt.s32.totalorder %s21, 3
      %p209 = pnand %p207, %p208
      %p210 = pneg %p209
      // Predicated region
      $region29: #{tpu_custom_call.1} parent=5 // pred_check
        _
      $region30: #{tpu_custom_call.1} parent=5 // pred_check_branch
        %212 = sbr.rel (%p209) target = $region32
      $region31: #{tpu_custom_call.1} parent=5 // pred_region
        %s213 = ssub.s32 %s21, 1
        %s214 = sand.u32 %s34, 1
        %s215 = scalar_lea.sflag [#allocation5], %s214
        %s216 = sand.u32 %s34, 1
        %s217 = smul.addr %s216, 64
        %s218 = scalar_lea.vmem [#allocation4], %s217
        // Predicated region
        $region33: #{tpu_custom_call.1} parent=31 // pred_check
          %p219 = pneg %p47
        $region34: #{tpu_custom_call.1} parent=31 // pred_check_branch
          %221 = sbr.rel (%p219) target = $region36
        $region35: #{tpu_custom_call.1} parent=31 // pred_region
          %222 = dma.done %s215, 1024
        $region36: #{tpu_custom_call.1} parent=31 // pred_fallthru
          _
        // Predicated region
        $region37: #{tpu_custom_call.1} parent=31 // pred_check
          %p223 = pneg %p68
        $region38: #{tpu_custom_call.1} parent=31 // pred_check_branch
          %225 = sbr.rel (%p223) target = $region40
        $region39: #{tpu_custom_call.1} parent=31 // pred_region
          %226 = dma.done [#allocation8], 30720
        $region40: #{tpu_custom_call.1} parent=31 // pred_fallthru
          _
        // Predicated region
        $region41: #{tpu_custom_call.1} parent=31 // pred_check
          %p227 = pneg %p89
        $region42: #{tpu_custom_call.1} parent=31 // pred_check_branch
          %229 = sbr.rel (%p227) target = $region44
        $region43: #{tpu_custom_call.1} parent=31 // pred_region
          %230 = dma.done [#allocation8], 80
        $region44: #{tpu_custom_call.1} parent=31 // pred_fallthru
          _
        %s231 = sand.u32 %s34, 1
        %s232 = scalar_lea.sflag [#allocation5], %s231
        %s233 = sand.u32 %s34, 1
        %s234 = smul.addr %s233, 64
        %s235 = scalar_lea.vmem [#allocation4], %s234
        %p236 = pneg %p47
        %p237 = pneg %p44
        %p238 = pneg %p68
        %p239 = pneg %p65
        %p240 = pneg %p89
        %p241 = pneg %p86
        %p242 = pneg %p115
        %p243 = pneg %p112
        %s244 = sand.u32 %s102, 1
        %s245 = scalar_lea.sflag [#allocation6], %s244
        %s246 = sand.u32 %s102, 1
        %s247 = smul.addr %s246, 64
        %s248 = scalar_lea.vmem [#allocation10], %s247
        %p249 = pneg %p141
        %p250 = pneg %p138
        %s251 = sand.u32 %s128, 1
        %s252 = scalar_lea.sflag [#allocation12], %s251
        %s253 = sand.u32 %s128, 1
        %s254 = smul.addr %s253, 64
        %s255 = scalar_lea.vmem [#allocation11], %s254
        %256 = vst [vmem:[#allocation2] sm:$0x1] 0.0
        %257 = vst [vmem:[#allocation2 + $0x41] sm:$0x1] 0.0
        %258 = vst [vmem:[#allocation3] sm:$0x1] 0.0
        %259 = vst [vmem:[#allocation3 + $0x41] sm:$0x1] 0.0
        %v260 = vld [vmem:[%s218] sm:$0xff]
        %v261 = vld [vmem:[%s218 + $0x8] sm:$0xff]
        %v262 = vld [vmem:[%s218 + $0x10] sm:$0xff]
        %v263 = vld [vmem:[%s218 + $0x18] sm:$0xff]
        %v264 = vld [vmem:[%s218 + $0x20] sm:$0xff]
        %v265 = vld [vmem:[%s218 + $0x28] sm:$0xff]
        %v266 = vld [vmem:[%s218 + $0x30] sm:$0xff]
        %v267 = vld [vmem:[%s218 + $0x38] sm:$0xff]
        %268 = vst [vmem:[#allocation2 + $0x1] sm:$0xff] %v260
        %269 = vst [vmem:[#allocation2 + $0x9] sm:$0xff] %v261
        %270 = vst [vmem:[#allocation2 + $0x11] sm:$0xff] %v262
        %271 = vst [vmem:[#allocation2 + $0x19] sm:$0xff] %v263
        %272 = vst [vmem:[#allocation2 + $0x21] sm:$0xff] %v264
        %273 = vst [vmem:[#allocation2 + $0x29] sm:$0xff] %v265
        %274 = vst [vmem:[#allocation2 + $0x31] sm:$0xff] %v266
        %275 = vst [vmem:[#allocation2 + $0x39] sm:$0xff] %v267
        %v276 = vld [vmem:[#allocation2] sm:$0xff]
        %v277 = vld [vmem:[#allocation2 + $0x8] sm:$0xff]
        %v278 = vld [vmem:[#allocation2 + $0x10] sm:$0xff]
        %v279 = vld [vmem:[#allocation2 + $0x18] sm:$0xff]
        %v280 = vld [vmem:[#allocation2 + $0x20] sm:$0xff]
        %v281 = vld [vmem:[#allocation2 + $0x28] sm:$0xff]
        %v282 = vld [vmem:[#allocation2 + $0x30] sm:$0xff]
        %v283 = vld [vmem:[#allocation2 + $0x38] sm:$0xff]
        %v284 = vld [vmem:[#allocation2 + $0x1] sm:$0xff]
        %v285 = vld [vmem:[#allocation2 + $0x9] sm:$0xff]
        %v286 = vld [vmem:[#allocation2 + $0x11] sm:$0xff]
        %v287 = vld [vmem:[#allocation2 + $0x19] sm:$0xff]
        %v288 = vld [vmem:[#allocation2 + $0x21] sm:$0xff]
        %v289 = vld [vmem:[#allocation2 + $0x29] sm:$0xff]
        %v290 = vld [vmem:[#allocation2 + $0x31] sm:$0xff]
        %v291 = vld [vmem:[#allocation2 + $0x39] sm:$0xff]
        %v292 = vld [vmem:[#allocation2 + $0x2] sm:$0xff]
        %v293 = vld [vmem:[#allocation2 + $0xa] sm:$0xff]
        %v294 = vld [vmem:[#allocation2 + $0x12] sm:$0xff]
        %v295 = vld [vmem:[#allocation2 + $0x1a] sm:$0xff]
        %v296 = vld [vmem:[#allocation2 + $0x22] sm:$0xff]
        %v297 = vld [vmem:[#allocation2 + $0x2a] sm:$0xff]
        %v298 = vld [vmem:[#allocation2 + $0x32] sm:$0xff]
        %v299 = vld [vmem:[#allocation2 + $0x3a] sm:$0xff]
        %v300 = vld [vmem:[#allocation7] sm:$0xff]
        %v301 = vld [vmem:[#allocation7 + $0x8] sm:$0xff]
        %v302 = vld [vmem:[#allocation7 + $0x10] sm:$0xff]
        %v303 = vld [vmem:[#allocation7 + $0x18] sm:$0xff]
        %v304 = vld [vmem:[#allocation7 + $0x20] sm:$0xff]
        %v305 = vld [vmem:[#allocation7 + $0x28] sm:$0xff]
        %v306 = vld [vmem:[#allocation7 + $0x30] sm:$0xff]
        %v307 = vld [vmem:[#allocation7 + $0x38] sm:$0xff]
        %v308 = vld [vmem:[#allocation7 + $0x40] sm:$0xff]
        %v309 = vld [vmem:[#allocation7 + $0x48] sm:$0xff]
        %v310 = vld [vmem:[#allocation7 + $0x50] sm:$0xff]
        %v311 = vld [vmem:[#allocation7 + $0x58] sm:$0xff]
        %v312 = vld [vmem:[#allocation7 + $0x60] sm:$0xff]
        %v313 = vld [vmem:[#allocation7 + $0x68] sm:$0xff]
        %v314 = vld [vmem:[#allocation7 + $0x70] sm:$0xff]
        %v315 = vld [vmem:[#allocation7 + $0x78] sm:$0xff]
        %v316 = vld [vmem:[#allocation7 + $0x80] sm:$0xff]
        %v317 = vld [vmem:[#allocation7 + $0x88] sm:$0xff]
        %v318 = vld [vmem:[#allocation7 + $0x90] sm:$0xff]
        %v319 = vld [vmem:[#allocation7 + $0x98] sm:$0xff]
        %v320 = vld [vmem:[#allocation7 + $0xa0] sm:$0xff]
        %v321 = vld [vmem:[#allocation7 + $0xa8] sm:$0xff]
        %v322 = vld [vmem:[#allocation7 + $0xb0] sm:$0xff]
        %v323 = vld [vmem:[#allocation7 + $0xb8] sm:$0xff]
        %v324 = vld [vmem:[#allocation7 + $0xc0] sm:$0xff]
        %v325 = vld [vmem:[#allocation7 + $0xc8] sm:$0xff]
        %v326 = vld [vmem:[#allocation7 + $0xd0] sm:$0xff]
        %v327 = vld [vmem:[#allocation7 + $0xd8] sm:$0xff]
        %v328 = vld [vmem:[#allocation7 + $0xe0] sm:$0xff]
        %v329 = vld [vmem:[#allocation7 + $0xe8] sm:$0xff]
        %v330 = vld [vmem:[#allocation7 + $0xf0] sm:$0xff]
        %v331 = vld [vmem:[#allocation7 + $0xf8] sm:$0xff]
        %v332 = vld [vmem:[#allocation7 + $0x100] sm:$0xff]
        %v333 = vld [vmem:[#allocation7 + $0x108] sm:$0xff]
        %v334 = vld [vmem:[#allocation7 + $0x110] sm:$0xff]
        %v335 = vld [vmem:[#allocation7 + $0x118] sm:$0xff]
        %v336 = vld [vmem:[#allocation7 + $0x120] sm:$0xff]
        %v337 = vld [vmem:[#allocation7 + $0x128] sm:$0xff]
        %v338 = vld [vmem:[#allocation7 + $0x130] sm:$0xff]
        %v339 = vld [vmem:[#allocation7 + $0x138] sm:$0xff]
        %v340 = vld [vmem:[#allocation7 + $0x140] sm:$0xff]
        %v341 = vld [vmem:[#allocation7 + $0x148] sm:$0xff]
        %v342 = vld [vmem:[#allocation7 + $0x150] sm:$0xff]
        %v343 = vld [vmem:[#allocation7 + $0x158] sm:$0xff]
        %v344 = vld [vmem:[#allocation7 + $0x160] sm:$0xff]
        %v345 = vld [vmem:[#allocation7 + $0x168] sm:$0xff]
        %v346 = vld [vmem:[#allocation7 + $0x170] sm:$0xff]
        %v347 = vld [vmem:[#allocation7 + $0x178] sm:$0xff]
        %v348 = vld [vmem:[#allocation9] sm:$0x1]
        %v350 = vlaneseq
        %v351 = vshrl.u32 %v350, 7
        %v352 = vsub.s32 0, %v351
        %v353 = vrot.slane %v348, %v352
        %355 = vmatprep.subr.mxu0 0.0
        %356 = vmatpush1.msra.mxu0 %v315
        %357 = vmatprep.subr.mxu0 0.0
        %358 = vmatpush1.msra.mxu0 %v314
        %359 = vmatprep.subr.mxu0 0.0
        %360 = vmatpush1.msra.mxu0 %v313
        %361 = vmatprep.subr.mxu0 0.0
        %362 = vmatpush1.msra.mxu0 %v312
        %363 = vmatprep.subr.mxu0 0.0
        %364 = vmatpush1.msra.mxu0 %v311
        %365 = vmatprep.subr.mxu0 0.0
        %366 = vmatpush1.msra.mxu0 %v310
        %367 = vmatprep.subr.mxu0 0.0
        %368 = vmatpush1.msra.mxu0 %v309
        %369 = vmatprep.subr.mxu0 0.0
        %370 = vmatpush1.msra.mxu0 %v308
        %371 = vmatprep.subr.mxu0 0.0
        %372 = vmatpush1.msra.mxu0 %v307
        %373 = vmatprep.subr.mxu0 0.0
        %374 = vmatpush1.msra.mxu0 %v306
        %375 = vmatprep.subr.mxu0 0.0
        %376 = vmatpush1.msra.mxu0 %v305
        %377 = vmatprep.subr.mxu0 0.0
        %378 = vmatpush1.msra.mxu0 %v304
        %379 = vmatprep.subr.mxu0 0.0
        %380 = vmatpush1.msra.mxu0 %v303
        %381 = vmatprep.subr.mxu0 0.0
        %382 = vmatpush1.msra.mxu0 %v302
        %383 = vmatprep.subr.mxu0 0.0
        %384 = vmatpush1.msra.mxu0 %v301
        %385 = vmatprep.subr.mxu0 0.0
        %386 = vmatpush1.msra.mxu0 %v300
        %387 = vmatprep.subr.mxu0 0.0
        %388 = vmatpush2.msra.mxu0 %v331
        %389 = vmatprep.subr.mxu0 0.0
        %390 = vmatpush2.msra.mxu0 %v330
        %391 = vmatprep.subr.mxu0 0.0
        %392 = vmatpush2.msra.mxu0 %v329
        %393 = vmatprep.subr.mxu0 0.0
        %394 = vmatpush2.msra.mxu0 %v328
        %395 = vmatprep.subr.mxu0 0.0
        %396 = vmatpush2.msra.mxu0 %v327
        %397 = vmatprep.subr.mxu0 0.0
        %398 = vmatpush2.msra.mxu0 %v326
        %399 = vmatprep.subr.mxu0 0.0
        %400 = vmatpush2.msra.mxu0 %v325
        %401 = vmatprep.subr.mxu0 0.0
        %402 = vmatpush2.msra.mxu0 %v324
        %403 = vmatprep.subr.mxu0 0.0
        %404 = vmatpush2.msra.mxu0 %v323
        %405 = vmatprep.subr.mxu0 0.0
        %406 = vmatpush2.msra.mxu0 %v322
        %407 = vmatprep.subr.mxu0 0.0
        %408 = vmatpush2.msra.mxu0 %v321
        %409 = vmatprep.subr.mxu0 0.0
        %410 = vmatpush2.msra.mxu0 %v320
        %411 = vmatprep.subr.mxu0 0.0
        %412 = vmatpush2.msra.mxu0 %v319
        %413 = vmatprep.subr.mxu0 0.0
        %414 = vmatpush2.msra.mxu0 %v318
        %415 = vmatprep.subr.mxu0 0.0
        %416 = vmatpush2.msra.mxu0 %v317
        %417 = vmatprep.subr.mxu0 0.0
        %418 = vmatpush2.msra.mxu0 %v316
        %419 = vmatprep.mubr.f32.mxu0 %v284
        %420 = vmatmul.mubr.f32.gmra.mxu0 %v276
        %v421 = vpop.f32.mrf.mxu0
        %v422 = vadd.f32 %v353, %v421
        %v423 = vpop.f32.mrf.mxu0
        %424 = vmatprep.mubr.f32.mxu0 %v285
        %425 = vmatmul.mubr.f32.gmra.mxu0 %v277
        %v426 = vpop.f32.mrf.mxu0
        %v427 = vadd.f32 %v353, %v426
        %v428 = vpop.f32.mrf.mxu0
        %429 = vmatprep.mubr.f32.mxu0 %v286
        %430 = vmatmul.mubr.f32.gmra.mxu0 %v278
        %v431 = vpop.f32.mrf.mxu0
        %v432 = vadd.f32 %v353, %v431
        %v433 = vpop.f32.mrf.mxu0
        %434 = vmatprep.mubr.f32.mxu0 %v287
        %435 = vmatmul.mubr.f32.gmra.mxu0 %v279
        %v436 = vpop.f32.mrf.mxu0
        %v437 = vadd.f32 %v353, %v436
        %v438 = vpop.f32.mrf.mxu0
        %439 = vmatprep.mubr.f32.mxu0 %v288
        %440 = vmatmul.mubr.f32.gmra.mxu0 %v280
        %v441 = vpop.f32.mrf.mxu0
        %v442 = vadd.f32 %v353, %v441
        %v443 = vpop.f32.mrf.mxu0
        %444 = vmatprep.mubr.f32.mxu0 %v289
        %445 = vmatmul.mubr.f32.gmra.mxu0 %v281
        %v446 = vpop.f32.mrf.mxu0
        %v447 = vadd.f32 %v353, %v446
        %v448 = vpop.f32.mrf.mxu0
        %449 = vmatprep.mubr.f32.mxu0 %v290
        %450 = vmatmul.mubr.f32.gmra.mxu0 %v282
        %v451 = vpop.f32.mrf.mxu0
        %v452 = vadd.f32 %v353, %v451
        %v453 = vpop.f32.mrf.mxu0
        %454 = vmatprep.mubr.f32.mxu0 %v291
        %455 = vmatmul.mubr.f32.gmra.mxu0 %v283
        %v456 = vpop.f32.mrf.mxu0
        %v457 = vadd.f32 %v353, %v456
        %v458 = vpop.f32.mrf.mxu0
        %459 = vdwg.mxu0
        %460 = vmatprep.subr.mxu0 0.0
        %461 = vmatpush1.msra.mxu0 %v347
        %462 = vmatprep.subr.mxu0 0.0
        %463 = vmatpush1.msra.mxu0 %v346
        %464 = vmatprep.subr.mxu0 0.0
        %465 = vmatpush1.msra.mxu0 %v345
        %466 = vmatprep.subr.mxu0 0.0
        %467 = vmatpush1.msra.mxu0 %v344
        %468 = vmatprep.subr.mxu0 0.0
        %469 = vmatpush1.msra.mxu0 %v343
        %470 = vmatprep.subr.mxu0 0.0
        %471 = vmatpush1.msra.mxu0 %v342
        %472 = vmatprep.subr.mxu0 0.0
        %473 = vmatpush1.msra.mxu0 %v341
        %474 = vmatprep.subr.mxu0 0.0
        %475 = vmatpush1.msra.mxu0 %v340
        %476 = vmatprep.subr.mxu0 0.0
        %477 = vmatpush1.msra.mxu0 %v339
        %478 = vmatprep.subr.mxu0 0.0
        %479 = vmatpush1.msra.mxu0 %v338
        %480 = vmatprep.subr.mxu0 0.0
        %481 = vmatpush1.msra.mxu0 %v337
        %482 = vmatprep.subr.mxu0 0.0
        %483 = vmatpush1.msra.mxu0 %v336
        %484 = vmatprep.subr.mxu0 0.0
        %485 = vmatpush1.msra.mxu0 %v335
        %486 = vmatprep.subr.mxu0 0.0
        %487 = vmatpush1.msra.mxu0 %v334
        %488 = vmatprep.subr.mxu0 0.0
        %489 = vmatpush1.msra.mxu0 %v333
        %490 = vmatprep.subr.mxu0 0.0
        %491 = vmatpush1.msra.mxu0 %v332
        %492 = vmatprep.subr.mxu0 0.0
        %493 = vmatpush2.msra.mxu0 0.0
        %494 = vmatprep.subr.mxu0 0.0
        %495 = vmatpush2.msra.mxu0 0.0
        %496 = vmatprep.subr.mxu0 0.0
        %497 = vmatpush2.msra.mxu0 0.0
        %498 = vmatprep.subr.mxu0 0.0
        %499 = vmatpush2.msra.mxu0 0.0
        %500 = vmatprep.subr.mxu0 0.0
        %501 = vmatpush2.msra.mxu0 0.0
        %502 = vmatprep.subr.mxu0 0.0
        %503 = vmatpush2.msra.mxu0 0.0
        %504 = vmatprep.subr.mxu0 0.0
        %505 = vmatpush2.msra.mxu0 0.0
        %506 = vmatprep.subr.mxu0 0.0
        %507 = vmatpush2.msra.mxu0 0.0
        %508 = vmatprep.subr.mxu0 0.0
        %509 = vmatpush2.msra.mxu0 0.0
        %510 = vmatprep.subr.mxu0 0.0
        %511 = vmatpush2.msra.mxu0 0.0
        %512 = vmatprep.subr.mxu0 0.0
        %513 = vmatpush2.msra.mxu0 0.0
        %514 = vmatprep.subr.mxu0 0.0
        %515 = vmatpush2.msra.mxu0 0.0
        %516 = vmatprep.subr.mxu0 0.0
        %517 = vmatpush2.msra.mxu0 0.0
        %518 = vmatprep.subr.mxu0 0.0
        %519 = vmatpush2.msra.mxu0 0.0
        %520 = vmatprep.subr.mxu0 0.0
        %521 = vmatpush2.msra.mxu0 0.0
        %522 = vmatprep.subr.mxu0 0.0
        %523 = vmatpush2.msra.mxu0 0.0
        %524 = vmatprep.mubr.f32.mxu0 0.0
        %525 = vmatmul.mubr.f32.gmra.mxu0 %v292
        %v526 = vpop.f32.mrf.mxu0
        %v527 = vadd.f32 %v422, %v526
        %v528 = vpop.f32.mrf.mxu0
        %529 = vmatprep.mubr.f32.mxu0 0.0
        %530 = vmatmul.mubr.f32.gmra.mxu0 %v293
        %v531 = vpop.f32.mrf.mxu0
        %v532 = vadd.f32 %v427, %v531
        %v533 = vpop.f32.mrf.mxu0
        %534 = vmatprep.mubr.f32.mxu0 0.0
        %535 = vmatmul.mubr.f32.gmra.mxu0 %v294
        %v536 = vpop.f32.mrf.mxu0
        %v537 = vadd.f32 %v432, %v536
        %v538 = vpop.f32.mrf.mxu0
        %539 = vmatprep.mubr.f32.mxu0 0.0
        %540 = vmatmul.mubr.f32.gmra.mxu0 %v295
        %v541 = vpop.f32.mrf.mxu0
        %v542 = vadd.f32 %v437, %v541
        %v543 = vpop.f32.mrf.mxu0
        %544 = vmatprep.mubr.f32.mxu0 0.0
        %545 = vmatmul.mubr.f32.gmra.mxu0 %v296
        %v546 = vpop.f32.mrf.mxu0
        %v547 = vadd.f32 %v442, %v546
        %v548 = vpop.f32.mrf.mxu0
        %549 = vmatprep.mubr.f32.mxu0 0.0
        %550 = vmatmul.mubr.f32.gmra.mxu0 %v297
        %v551 = vpop.f32.mrf.mxu0
        %v552 = vadd.f32 %v447, %v551
        %v553 = vpop.f32.mrf.mxu0
        %554 = vmatprep.mubr.f32.mxu0 0.0
        %555 = vmatmul.mubr.f32.gmra.mxu0 %v298
        %v556 = vpop.f32.mrf.mxu0
        %v557 = vadd.f32 %v452, %v556
        %v558 = vpop.f32.mrf.mxu0
        %559 = vmatprep.mubr.f32.mxu0 0.0
        %560 = vmatmul.mubr.f32.gmra.mxu0 %v299
        %v561 = vpop.f32.mrf.mxu0
        %v562 = vadd.f32 %v457, %v561
        %v563 = vpop.f32.mrf.mxu0
        %564 = vdwg.mxu0
        %v565 = vmax.f32 %v527, 0.0
        %v566 = vmax.f32 %v532, 0.0
        %v567 = vmax.f32 %v537, 0.0
        %v568 = vmax.f32 %v542, 0.0
        %v569 = vmax.f32 %v547, 0.0
        %v570 = vmax.f32 %v552, 0.0
        %v571 = vmax.f32 %v557, 0.0
        %v572 = vmax.f32 %v562, 0.0
        %573 = vst [vmem:[#allocation3 + $0x1] sm:$0xff] %v565
        %574 = vst [vmem:[#allocation3 + $0x9] sm:$0xff] %v566
        %575 = vst [vmem:[#allocation3 + $0x11] sm:$0xff] %v567
        %576 = vst [vmem:[#allocation3 + $0x19] sm:$0xff] %v568
        %577 = vst [vmem:[#allocation3 + $0x21] sm:$0xff] %v569
        %578 = vst [vmem:[#allocation3 + $0x29] sm:$0xff] %v570
        %579 = vst [vmem:[#allocation3 + $0x31] sm:$0xff] %v571
        %580 = vst [vmem:[#allocation3 + $0x39] sm:$0xff] %v572
        %v581 = vld [vmem:[#allocation3] sm:$0xff]
        %v582 = vld [vmem:[#allocation3 + $0x8] sm:$0xff]
        %v583 = vld [vmem:[#allocation3 + $0x10] sm:$0xff]
        %v584 = vld [vmem:[#allocation3 + $0x18] sm:$0xff]
        %v585 = vld [vmem:[#allocation3 + $0x20] sm:$0xff]
        %v586 = vld [vmem:[#allocation3 + $0x28] sm:$0xff]
        %v587 = vld [vmem:[#allocation3 + $0x30] sm:$0xff]
        %v588 = vld [vmem:[#allocation3 + $0x38] sm:$0xff]
        %v589 = vld [vmem:[#allocation3 + $0x1] sm:$0xff]
        %v590 = vld [vmem:[#allocation3 + $0x9] sm:$0xff]
        %v591 = vld [vmem:[#allocation3 + $0x11] sm:$0xff]
        %v592 = vld [vmem:[#allocation3 + $0x19] sm:$0xff]
        %v593 = vld [vmem:[#allocation3 + $0x21] sm:$0xff]
        %v594 = vld [vmem:[#allocation3 + $0x29] sm:$0xff]
        %v595 = vld [vmem:[#allocation3 + $0x31] sm:$0xff]
        %v596 = vld [vmem:[#allocation3 + $0x39] sm:$0xff]
        %v597 = vld [vmem:[#allocation3 + $0x2] sm:$0xff]
        %v598 = vld [vmem:[#allocation3 + $0xa] sm:$0xff]
        %v599 = vld [vmem:[#allocation3 + $0x12] sm:$0xff]
        %v600 = vld [vmem:[#allocation3 + $0x1a] sm:$0xff]
        %v601 = vld [vmem:[#allocation3 + $0x22] sm:$0xff]
        %v602 = vld [vmem:[#allocation3 + $0x2a] sm:$0xff]
        %v603 = vld [vmem:[#allocation3 + $0x32] sm:$0xff]
        %v604 = vld [vmem:[#allocation3 + $0x3a] sm:$0xff]
        %s605 = scalar_lea.vmem [#allocation7], 384
        %v606 = vld [vmem:[%s605] sm:$0xff]
        %v607 = vld [vmem:[%s605 + $0x8] sm:$0xff]
        %v608 = vld [vmem:[%s605 + $0x10] sm:$0xff]
        %v609 = vld [vmem:[%s605 + $0x18] sm:$0xff]
        %v610 = vld [vmem:[%s605 + $0x20] sm:$0xff]
        %v611 = vld [vmem:[%s605 + $0x28] sm:$0xff]
        %v612 = vld [vmem:[%s605 + $0x30] sm:$0xff]
        %v613 = vld [vmem:[%s605 + $0x38] sm:$0xff]
        %v614 = vld [vmem:[%s605 + $0x40] sm:$0xff]
        %v615 = vld [vmem:[%s605 + $0x48] sm:$0xff]
        %v616 = vld [vmem:[%s605 + $0x50] sm:$0xff]
        %v617 = vld [vmem:[%s605 + $0x58] sm:$0xff]
        %v618 = vld [vmem:[%s605 + $0x60] sm:$0xff]
        %v619 = vld [vmem:[%s605 + $0x68] sm:$0xff]
        %v620 = vld [vmem:[%s605 + $0x70] sm:$0xff]
        %v621 = vld [vmem:[%s605 + $0x78] sm:$0xff]
        %v622 = vld [vmem:[%s605 + $0x80] sm:$0xff]
        %v623 = vld [vmem:[%s605 + $0x88] sm:$0xff]
        %v624 = vld [vmem:[%s605 + $0x90] sm:$0xff]
        %v625 = vld [vmem:[%s605 + $0x98] sm:$0xff]
        %v626 = vld [vmem:[%s605 + $0xa0] sm:$0xff]
        %v627 = vld [vmem:[%s605 + $0xa8] sm:$0xff]
        %v628 = vld [vmem:[%s605 + $0xb0] sm:$0xff]
        %v629 = vld [vmem:[%s605 + $0xb8] sm:$0xff]
        %v630 = vld [vmem:[%s605 + $0xc0] sm:$0xff]
        %v631 = vld [vmem:[%s605 + $0xc8] sm:$0xff]
        %v632 = vld [vmem:[%s605 + $0xd0] sm:$0xff]
        %v633 = vld [vmem:[%s605 + $0xd8] sm:$0xff]
        %v634 = vld [vmem:[%s605 + $0xe0] sm:$0xff]
        %v635 = vld [vmem:[%s605 + $0xe8] sm:$0xff]
        %v636 = vld [vmem:[%s605 + $0xf0] sm:$0xff]
        %v637 = vld [vmem:[%s605 + $0xf8] sm:$0xff]
        %v638 = vld [vmem:[%s605 + $0x100] sm:$0xff]
        %v639 = vld [vmem:[%s605 + $0x108] sm:$0xff]
        %v640 = vld [vmem:[%s605 + $0x110] sm:$0xff]
        %v641 = vld [vmem:[%s605 + $0x118] sm:$0xff]
        %v642 = vld [vmem:[%s605 + $0x120] sm:$0xff]
        %v643 = vld [vmem:[%s605 + $0x128] sm:$0xff]
        %v644 = vld [vmem:[%s605 + $0x130] sm:$0xff]
        %v645 = vld [vmem:[%s605 + $0x138] sm:$0xff]
        %v646 = vld [vmem:[%s605 + $0x140] sm:$0xff]
        %v647 = vld [vmem:[%s605 + $0x148] sm:$0xff]
        %v648 = vld [vmem:[%s605 + $0x150] sm:$0xff]
        %v649 = vld [vmem:[%s605 + $0x158] sm:$0xff]
        %v650 = vld [vmem:[%s605 + $0x160] sm:$0xff]
        %v651 = vld [vmem:[%s605 + $0x168] sm:$0xff]
        %v652 = vld [vmem:[%s605 + $0x170] sm:$0xff]
        %v653 = vld [vmem:[%s605 + $0x178] sm:$0xff]
        %s654 = scalar_lea.vmem [#allocation9], 1
        %v655 = vld [vmem:[%s654] sm:$0x1]
        %v657 = vlaneseq
        %v658 = vshrl.u32 %v657, 7
        %v659 = vsub.s32 0, %v658
        %v660 = vrot.slane %v655, %v659
        %662 = vmatprep.subr.mxu0 0.0
        %663 = vmatpush1.msra.mxu0 %v621
        %664 = vmatprep.subr.mxu0 0.0
        %665 = vmatpush1.msra.mxu0 %v620
        %666 = vmatprep.subr.mxu0 0.0
        %667 = vmatpush1.msra.mxu0 %v619
        %668 = vmatprep.subr.mxu0 0.0
        %669 = vmatpush1.msra.mxu0 %v618
        %670 = vmatprep.subr.mxu0 0.0
        %671 = vmatpush1.msra.mxu0 %v617
        %672 = vmatprep.subr.mxu0 0.0
        %673 = vmatpush1.msra.mxu0 %v616
        %674 = vmatprep.subr.mxu0 0.0
        %675 = vmatpush1.msra.mxu0 %v615
        %676 = vmatprep.subr.mxu0 0.0
        %677 = vmatpush1.msra.mxu0 %v614
        %678 = vmatprep.subr.mxu0 0.0
        %679 = vmatpush1.msra.mxu0 %v613
        %680 = vmatprep.subr.mxu0 0.0
        %681 = vmatpush1.msra.mxu0 %v612
        %682 = vmatprep.subr.mxu0 0.0
        %683 = vmatpush1.msra.mxu0 %v611
        %684 = vmatprep.subr.mxu0 0.0
        %685 = vmatpush1.msra.mxu0 %v610
        %686 = vmatprep.subr.mxu0 0.0
        %687 = vmatpush1.msra.mxu0 %v609
        %688 = vmatprep.subr.mxu0 0.0
        %689 = vmatpush1.msra.mxu0 %v608
        %690 = vmatprep.subr.mxu0 0.0
        %691 = vmatpush1.msra.mxu0 %v607
        %692 = vmatprep.subr.mxu0 0.0
        %693 = vmatpush1.msra.mxu0 %v606
        %694 = vmatprep.subr.mxu0 0.0
        %695 = vmatpush2.msra.mxu0 %v637
        %696 = vmatprep.subr.mxu0 0.0
        %697 = vmatpush2.msra.mxu0 %v636
        %698 = vmatprep.subr.mxu0 0.0
        %699 = vmatpush2.msra.mxu0 %v635
        %700 = vmatprep.subr.mxu0 0.0
        %701 = vmatpush2.msra.mxu0 %v634
        %702 = vmatprep.subr.mxu0 0.0
        %703 = vmatpush2.msra.mxu0 %v633
        %704 = vmatprep.subr.mxu0 0.0
        %705 = vmatpush2.msra.mxu0 %v632
        %706 = vmatprep.subr.mxu0 0.0
        %707 = vmatpush2.msra.mxu0 %v631
        %708 = vmatprep.subr.mxu0 0.0
        %709 = vmatpush2.msra.mxu0 %v630
        %710 = vmatprep.subr.mxu0 0.0
        %711 = vmatpush2.msra.mxu0 %v629
        %712 = vmatprep.subr.mxu0 0.0
        %713 = vmatpush2.msra.mxu0 %v628
        %714 = vmatprep.subr.mxu0 0.0
        %715 = vmatpush2.msra.mxu0 %v627
        %716 = vmatprep.subr.mxu0 0.0
        %717 = vmatpush2.msra.mxu0 %v626
        %718 = vmatprep.subr.mxu0 0.0
        %719 = vmatpush2.msra.mxu0 %v625
        %720 = vmatprep.subr.mxu0 0.0
        %721 = vmatpush2.msra.mxu0 %v624
        %722 = vmatprep.subr.mxu0 0.0
        %723 = vmatpush2.msra.mxu0 %v623
        %724 = vmatprep.subr.mxu0 0.0
        %725 = vmatpush2.msra.mxu0 %v622
        %726 = vmatprep.mubr.f32.mxu0 %v589
        %727 = vmatmul.mubr.f32.gmra.mxu0 %v581
        %v728 = vpop.f32.mrf.mxu0
        %v729 = vadd.f32 %v660, %v728
        %v730 = vpop.f32.mrf.mxu0
        %731 = vmatprep.mubr.f32.mxu0 %v590
        %732 = vmatmul.mubr.f32.gmra.mxu0 %v582
        %v733 = vpop.f32.mrf.mxu0
        %v734 = vadd.f32 %v660, %v733
        %v735 = vpop.f32.mrf.mxu0
        %736 = vmatprep.mubr.f32.mxu0 %v591
        %737 = vmatmul.mubr.f32.gmra.mxu0 %v583
        %v738 = vpop.f32.mrf.mxu0
        %v739 = vadd.f32 %v660, %v738
        %v740 = vpop.f32.mrf.mxu0
        %741 = vmatprep.mubr.f32.mxu0 %v592
        %742 = vmatmul.mubr.f32.gmra.mxu0 %v584
        %v743 = vpop.f32.mrf.mxu0
        %v744 = vadd.f32 %v660, %v743
        %v745 = vpop.f32.mrf.mxu0
        %746 = vmatprep.mubr.f32.mxu0 %v593
        %747 = vmatmul.mubr.f32.gmra.mxu0 %v585
        %v748 = vpop.f32.mrf.mxu0
        %v749 = vadd.f32 %v660, %v748
        %v750 = vpop.f32.mrf.mxu0
        %751 = vmatprep.mubr.f32.mxu0 %v594
        %752 = vmatmul.mubr.f32.gmra.mxu0 %v586
        %v753 = vpop.f32.mrf.mxu0
        %v754 = vadd.f32 %v660, %v753
        %v755 = vpop.f32.mrf.mxu0
        %756 = vmatprep.mubr.f32.mxu0 %v595
        %757 = vmatmul.mubr.f32.gmra.mxu0 %v587
        %v758 = vpop.f32.mrf.mxu0
        %v759 = vadd.f32 %v660, %v758
        %v760 = vpop.f32.mrf.mxu0
        %761 = vmatprep.mubr.f32.mxu0 %v596
        %762 = vmatmul.mubr.f32.gmra.mxu0 %v588
        %v763 = vpop.f32.mrf.mxu0
        %v764 = vadd.f32 %v660, %v763
        %v765 = vpop.f32.mrf.mxu0
        %766 = vdwg.mxu0
        %767 = vmatprep.subr.mxu0 0.0
        %768 = vmatpush1.msra.mxu0 %v653
        %769 = vmatprep.subr.mxu0 0.0
        %770 = vmatpush1.msra.mxu0 %v652
        %771 = vmatprep.subr.mxu0 0.0
        %772 = vmatpush1.msra.mxu0 %v651
        %773 = vmatprep.subr.mxu0 0.0
        %774 = vmatpush1.msra.mxu0 %v650
        %775 = vmatprep.subr.mxu0 0.0
        %776 = vmatpush1.msra.mxu0 %v649
        %777 = vmatprep.subr.mxu0 0.0
        %778 = vmatpush1.msra.mxu0 %v648
        %779 = vmatprep.subr.mxu0 0.0
        %780 = vmatpush1.msra.mxu0 %v647
        %781 = vmatprep.subr.mxu0 0.0
        %782 = vmatpush1.msra.mxu0 %v646
        %783 = vmatprep.subr.mxu0 0.0
        %784 = vmatpush1.msra.mxu0 %v645
        %785 = vmatprep.subr.mxu0 0.0
        %786 = vmatpush1.msra.mxu0 %v644
        %787 = vmatprep.subr.mxu0 0.0
        %788 = vmatpush1.msra.mxu0 %v643
        %789 = vmatprep.subr.mxu0 0.0
        %790 = vmatpush1.msra.mxu0 %v642
        %791 = vmatprep.subr.mxu0 0.0
        %792 = vmatpush1.msra.mxu0 %v641
        %793 = vmatprep.subr.mxu0 0.0
        %794 = vmatpush1.msra.mxu0 %v640
        %795 = vmatprep.subr.mxu0 0.0
        %796 = vmatpush1.msra.mxu0 %v639
        %797 = vmatprep.subr.mxu0 0.0
        %798 = vmatpush1.msra.mxu0 %v638
        %799 = vmatprep.subr.mxu0 0.0
        %800 = vmatpush2.msra.mxu0 0.0
        %801 = vmatprep.subr.mxu0 0.0
        %802 = vmatpush2.msra.mxu0 0.0
        %803 = vmatprep.subr.mxu0 0.0
        %804 = vmatpush2.msra.mxu0 0.0
        %805 = vmatprep.subr.mxu0 0.0
        %806 = vmatpush2.msra.mxu0 0.0
        %807 = vmatprep.subr.mxu0 0.0
        %808 = vmatpush2.msra.mxu0 0.0
        %809 = vmatprep.subr.mxu0 0.0
        %810 = vmatpush2.msra.mxu0 0.0
        %811 = vmatprep.subr.mxu0 0.0
        %812 = vmatpush2.msra.mxu0 0.0
        %813 = vmatprep.subr.mxu0 0.0
        %814 = vmatpush2.msra.mxu0 0.0
        %815 = vmatprep.subr.mxu0 0.0
        %816 = vmatpush2.msra.mxu0 0.0
        %817 = vmatprep.subr.mxu0 0.0
        %818 = vmatpush2.msra.mxu0 0.0
        %819 = vmatprep.subr.mxu0 0.0
        %820 = vmatpush2.msra.mxu0 0.0
        %821 = vmatprep.subr.mxu0 0.0
        %822 = vmatpush2.msra.mxu0 0.0
        %823 = vmatprep.subr.mxu0 0.0
        %824 = vmatpush2.msra.mxu0 0.0
        %825 = vmatprep.subr.mxu0 0.0
        %826 = vmatpush2.msra.mxu0 0.0
        %827 = vmatprep.subr.mxu0 0.0
        %828 = vmatpush2.msra.mxu0 0.0
        %829 = vmatprep.subr.mxu0 0.0
        %830 = vmatpush2.msra.mxu0 0.0
        %831 = vmatprep.mubr.f32.mxu0 0.0
        %832 = vmatmul.mubr.f32.gmra.mxu0 %v597
        %v833 = vpop.f32.mrf.mxu0
        %v834 = vadd.f32 %v729, %v833
        %v835 = vpop.f32.mrf.mxu0
        %836 = vmatprep.mubr.f32.mxu0 0.0
        %837 = vmatmul.mubr.f32.gmra.mxu0 %v598
        %v838 = vpop.f32.mrf.mxu0
        %v839 = vadd.f32 %v734, %v838
        %v840 = vpop.f32.mrf.mxu0
        %841 = vmatprep.mubr.f32.mxu0 0.0
        %842 = vmatmul.mubr.f32.gmra.mxu0 %v599
        %v843 = vpop.f32.mrf.mxu0
        %v844 = vadd.f32 %v739, %v843
        %v845 = vpop.f32.mrf.mxu0
        %846 = vmatprep.mubr.f32.mxu0 0.0
        %847 = vmatmul.mubr.f32.gmra.mxu0 %v600
        %v848 = vpop.f32.mrf.mxu0
        %v849 = vadd.f32 %v744, %v848
        %v850 = vpop.f32.mrf.mxu0
        %851 = vmatprep.mubr.f32.mxu0 0.0
        %852 = vmatmul.mubr.f32.gmra.mxu0 %v601
        %v853 = vpop.f32.mrf.mxu0
        %v854 = vadd.f32 %v749, %v853
        %v855 = vpop.f32.mrf.mxu0
        %856 = vmatprep.mubr.f32.mxu0 0.0
        %857 = vmatmul.mubr.f32.gmra.mxu0 %v602
        %v858 = vpop.f32.mrf.mxu0
        %v859 = vadd.f32 %v754, %v858
        %v860 = vpop.f32.mrf.mxu0
        %861 = vmatprep.mubr.f32.mxu0 0.0
        %862 = vmatmul.mubr.f32.gmra.mxu0 %v603
        %v863 = vpop.f32.mrf.mxu0
        %v864 = vadd.f32 %v759, %v863
        %v865 = vpop.f32.mrf.mxu0
        %866 = vmatprep.mubr.f32.mxu0 0.0
        %867 = vmatmul.mubr.f32.gmra.mxu0 %v604
        %v868 = vpop.f32.mrf.mxu0
        %v869 = vadd.f32 %v764, %v868
        %v870 = vpop.f32.mrf.mxu0
        %871 = vdwg.mxu0
        %v872 = vmax.f32 %v834, 0.0
        %v873 = vmax.f32 %v839, 0.0
        %v874 = vmax.f32 %v844, 0.0
        %v875 = vmax.f32 %v849, 0.0
        %v876 = vmax.f32 %v854, 0.0
        %v877 = vmax.f32 %v859, 0.0
        %v878 = vmax.f32 %v864, 0.0
        %v879 = vmax.f32 %v869, 0.0
        %880 = vst [vmem:[#allocation2 + $0x1] sm:$0xff] %v872
        %881 = vst [vmem:[#allocation2 + $0x9] sm:$0xff] %v873
        %882 = vst [vmem:[#allocation2 + $0x11] sm:$0xff] %v874
        %883 = vst [vmem:[#allocation2 + $0x19] sm:$0xff] %v875
        %884 = vst [vmem:[#allocation2 + $0x21] sm:$0xff] %v876
        %885 = vst [vmem:[#allocation2 + $0x29] sm:$0xff] %v877
        %886 = vst [vmem:[#allocation2 + $0x31] sm:$0xff] %v878
        %887 = vst [vmem:[#allocation2 + $0x39] sm:$0xff] %v879
        %v888 = vld [vmem:[#allocation2] sm:$0xff]
        %v889 = vld [vmem:[#allocation2 + $0x8] sm:$0xff]
        %v890 = vld [vmem:[#allocation2 + $0x10] sm:$0xff]
        %v891 = vld [vmem:[#allocation2 + $0x18] sm:$0xff]
        %v892 = vld [vmem:[#allocation2 + $0x20] sm:$0xff]
        %v893 = vld [vmem:[#allocation2 + $0x28] sm:$0xff]
        %v894 = vld [vmem:[#allocation2 + $0x30] sm:$0xff]
        %v895 = vld [vmem:[#allocation2 + $0x38] sm:$0xff]
        %v896 = vld [vmem:[#allocation2 + $0x1] sm:$0xff]
        %v897 = vld [vmem:[#allocation2 + $0x9] sm:$0xff]
        %v898 = vld [vmem:[#allocation2 + $0x11] sm:$0xff]
        %v899 = vld [vmem:[#allocation2 + $0x19] sm:$0xff]
        %v900 = vld [vmem:[#allocation2 + $0x21] sm:$0xff]
        %v901 = vld [vmem:[#allocation2 + $0x29] sm:$0xff]
        %v902 = vld [vmem:[#allocation2 + $0x31] sm:$0xff]
        %v903 = vld [vmem:[#allocation2 + $0x39] sm:$0xff]
        %v904 = vld [vmem:[#allocation2 + $0x2] sm:$0xff]
        %v905 = vld [vmem:[#allocation2 + $0xa] sm:$0xff]
        %v906 = vld [vmem:[#allocation2 + $0x12] sm:$0xff]
        %v907 = vld [vmem:[#allocation2 + $0x1a] sm:$0xff]
        %v908 = vld [vmem:[#allocation2 + $0x22] sm:$0xff]
        %v909 = vld [vmem:[#allocation2 + $0x2a] sm:$0xff]
        %v910 = vld [vmem:[#allocation2 + $0x32] sm:$0xff]
        %v911 = vld [vmem:[#allocation2 + $0x3a] sm:$0xff]
        %s912 = scalar_lea.vmem [#allocation7], 768
        %v913 = vld [vmem:[%s912] sm:$0xff]
        %v914 = vld [vmem:[%s912 + $0x8] sm:$0xff]
        %v915 = vld [vmem:[%s912 + $0x10] sm:$0xff]
        %v916 = vld [vmem:[%s912 + $0x18] sm:$0xff]
        %v917 = vld [vmem:[%s912 + $0x20] sm:$0xff]
        %v918 = vld [vmem:[%s912 + $0x28] sm:$0xff]
        %v919 = vld [vmem:[%s912 + $0x30] sm:$0xff]
        %v920 = vld [vmem:[%s912 + $0x38] sm:$0xff]
        %v921 = vld [vmem:[%s912 + $0x40] sm:$0xff]
        %v922 = vld [vmem:[%s912 + $0x48] sm:$0xff]
        %v923 = vld [vmem:[%s912 + $0x50] sm:$0xff]
        %v924 = vld [vmem:[%s912 + $0x58] sm:$0xff]
        %v925 = vld [vmem:[%s912 + $0x60] sm:$0xff]
        %v926 = vld [vmem:[%s912 + $0x68] sm:$0xff]
        %v927 = vld [vmem:[%s912 + $0x70] sm:$0xff]
        %v928 = vld [vmem:[%s912 + $0x78] sm:$0xff]
        %v929 = vld [vmem:[%s912 + $0x80] sm:$0xff]
        %v930 = vld [vmem:[%s912 + $0x88] sm:$0xff]
        %v931 = vld [vmem:[%s912 + $0x90] sm:$0xff]
        %v932 = vld [vmem:[%s912 + $0x98] sm:$0xff]
        %v933 = vld [vmem:[%s912 + $0xa0] sm:$0xff]
        %v934 = vld [vmem:[%s912 + $0xa8] sm:$0xff]
        %v935 = vld [vmem:[%s912 + $0xb0] sm:$0xff]
        %v936 = vld [vmem:[%s912 + $0xb8] sm:$0xff]
        %v937 = vld [vmem:[%s912 + $0xc0] sm:$0xff]
        %v938 = vld [vmem:[%s912 + $0xc8] sm:$0xff]
        %v939 = vld [vmem:[%s912 + $0xd0] sm:$0xff]
        %v940 = vld [vmem:[%s912 + $0xd8] sm:$0xff]
        %v941 = vld [vmem:[%s912 + $0xe0] sm:$0xff]
        %v942 = vld [vmem:[%s912 + $0xe8] sm:$0xff]
        %v943 = vld [vmem:[%s912 + $0xf0] sm:$0xff]
        %v944 = vld [vmem:[%s912 + $0xf8] sm:$0xff]
        %v945 = vld [vmem:[%s912 + $0x100] sm:$0xff]
        %v946 = vld [vmem:[%s912 + $0x108] sm:$0xff]
        %v947 = vld [vmem:[%s912 + $0x110] sm:$0xff]
        %v948 = vld [vmem:[%s912 + $0x118] sm:$0xff]
        %v949 = vld [vmem:[%s912 + $0x120] sm:$0xff]
        %v950 = vld [vmem:[%s912 + $0x128] sm:$0xff]
        %v951 = vld [vmem:[%s912 + $0x130] sm:$0xff]
        %v952 = vld [vmem:[%s912 + $0x138] sm:$0xff]
        %v953 = vld [vmem:[%s912 + $0x140] sm:$0xff]
        %v954 = vld [vmem:[%s912 + $0x148] sm:$0xff]
        %v955 = vld [vmem:[%s912 + $0x150] sm:$0xff]
        %v956 = vld [vmem:[%s912 + $0x158] sm:$0xff]
        %v957 = vld [vmem:[%s912 + $0x160] sm:$0xff]
        %v958 = vld [vmem:[%s912 + $0x168] sm:$0xff]
        %v959 = vld [vmem:[%s912 + $0x170] sm:$0xff]
        %v960 = vld [vmem:[%s912 + $0x178] sm:$0xff]
        %s961 = scalar_lea.vmem [#allocation9], 2
        %v962 = vld [vmem:[%s961] sm:$0x1]
        %v964 = vlaneseq
        %v965 = vshrl.u32 %v964, 7
        %v966 = vsub.s32 0, %v965
        %v967 = vrot.slane %v962, %v966
        %969 = vmatprep.subr.mxu0 0.0
        %970 = vmatpush1.msra.mxu0 %v928
        %971 = vmatprep.subr.mxu0 0.0
        %972 = vmatpush1.msra.mxu0 %v927
        %973 = vmatprep.subr.mxu0 0.0
        %974 = vmatpush1.msra.mxu0 %v926
        %975 = vmatprep.subr.mxu0 0.0
        %976 = vmatpush1.msra.mxu0 %v925
        %977 = vmatprep.subr.mxu0 0.0
        %978 = vmatpush1.msra.mxu0 %v924
        %979 = vmatprep.subr.mxu0 0.0
        %980 = vmatpush1.msra.mxu0 %v923
        %981 = vmatprep.subr.mxu0 0.0
        %982 = vmatpush1.msra.mxu0 %v922
        %983 = vmatprep.subr.mxu0 0.0
        %984 = vmatpush1.msra.mxu0 %v921
        %985 = vmatprep.subr.mxu0 0.0
        %986 = vmatpush1.msra.mxu0 %v920
        %987 = vmatprep.subr.mxu0 0.0
        %988 = vmatpush1.msra.mxu0 %v919
        %989 = vmatprep.subr.mxu0 0.0
        %990 = vmatpush1.msra.mxu0 %v918
        %991 = vmatprep.subr.mxu0 0.0
        %992 = vmatpush1.msra.mxu0 %v917
        %993 = vmatprep.subr.mxu0 0.0
        %994 = vmatpush1.msra.mxu0 %v916
        %995 = vmatprep.subr.mxu0 0.0
        %996 = vmatpush1.msra.mxu0 %v915
        %997 = vmatprep.subr.mxu0 0.0
        %998 = vmatpush1.msra.mxu0 %v914
        %999 = vmatprep.subr.mxu0 0.0
        %1000 = vmatpush1.msra.mxu0 %v913
        %1001 = vmatprep.subr.mxu0 0.0
        %1002 = vmatpush2.msra.mxu0 %v944
        %1003 = vmatprep.subr.mxu0 0.0
        %1004 = vmatpush2.msra.mxu0 %v943
        %1005 = vmatprep.subr.mxu0 0.0
        %1006 = vmatpush2.msra.mxu0 %v942
        %1007 = vmatprep.subr.mxu0 0.0
        %1008 = vmatpush2.msra.mxu0 %v941
        %1009 = vmatprep.subr.mxu0 0.0
        %1010 = vmatpush2.msra.mxu0 %v940
        %1011 = vmatprep.subr.mxu0 0.0
        %1012 = vmatpush2.msra.mxu0 %v939
        %1013 = vmatprep.subr.mxu0 0.0
        %1014 = vmatpush2.msra.mxu0 %v938
        %1015 = vmatprep.subr.mxu0 0.0
        %1016 = vmatpush2.msra.mxu0 %v937
        %1017 = vmatprep.subr.mxu0 0.0
        %1018 = vmatpush2.msra.mxu0 %v936
        %1019 = vmatprep.subr.mxu0 0.0
        %1020 = vmatpush2.msra.mxu0 %v935
        %1021 = vmatprep.subr.mxu0 0.0
        %1022 = vmatpush2.msra.mxu0 %v934
        %1023 = vmatprep.subr.mxu0 0.0
        %1024 = vmatpush2.msra.mxu0 %v933
        %1025 = vmatprep.subr.mxu0 0.0
        %1026 = vmatpush2.msra.mxu0 %v932
        %1027 = vmatprep.subr.mxu0 0.0
        %1028 = vmatpush2.msra.mxu0 %v931
        %1029 = vmatprep.subr.mxu0 0.0
        %1030 = vmatpush2.msra.mxu0 %v930
        %1031 = vmatprep.subr.mxu0 0.0
        %1032 = vmatpush2.msra.mxu0 %v929
        %1033 = vmatprep.mubr.f32.mxu0 %v896
        %1034 = vmatmul.mubr.f32.gmra.mxu0 %v888
        %v1035 = vpop.f32.mrf.mxu0
        %v1036 = vadd.f32 %v967, %v1035
        %v1037 = vpop.f32.mrf.mxu0
        %1038 = vmatprep.mubr.f32.mxu0 %v897
        %1039 = vmatmul.mubr.f32.gmra.mxu0 %v889
        %v1040 = vpop.f32.mrf.mxu0
        %v1041 = vadd.f32 %v967, %v1040
        %v1042 = vpop.f32.mrf.mxu0
        %1043 = vmatprep.mubr.f32.mxu0 %v898
        %1044 = vmatmul.mubr.f32.gmra.mxu0 %v890
        %v1045 = vpop.f32.mrf.mxu0
        %v1046 = vadd.f32 %v967, %v1045
        %v1047 = vpop.f32.mrf.mxu0
        %1048 = vmatprep.mubr.f32.mxu0 %v899
        %1049 = vmatmul.mubr.f32.gmra.mxu0 %v891
        %v1050 = vpop.f32.mrf.mxu0
        %v1051 = vadd.f32 %v967, %v1050
        %v1052 = vpop.f32.mrf.mxu0
        %1053 = vmatprep.mubr.f32.mxu0 %v900
        %1054 = vmatmul.mubr.f32.gmra.mxu0 %v892
        %v1055 = vpop.f32.mrf.mxu0
        %v1056 = vadd.f32 %v967, %v1055
        %v1057 = vpop.f32.mrf.mxu0
        %1058 = vmatprep.mubr.f32.mxu0 %v901
        %1059 = vmatmul.mubr.f32.gmra.mxu0 %v893
        %v1060 = vpop.f32.mrf.mxu0
        %v1061 = vadd.f32 %v967, %v1060
        %v1062 = vpop.f32.mrf.mxu0
        %1063 = vmatprep.mubr.f32.mxu0 %v902
        %1064 = vmatmul.mubr.f32.gmra.mxu0 %v894
        %v1065 = vpop.f32.mrf.mxu0
        %v1066 = vadd.f32 %v967, %v1065
        %v1067 = vpop.f32.mrf.mxu0
        %1068 = vmatprep.mubr.f32.mxu0 %v903
        %1069 = vmatmul.mubr.f32.gmra.mxu0 %v895
        %v1070 = vpop.f32.mrf.mxu0
        %v1071 = vadd.f32 %v967, %v1070
        %v1072 = vpop.f32.mrf.mxu0
        %1073 = vdwg.mxu0
        %1074 = vmatprep.subr.mxu0 0.0
        %1075 = vmatpush1.msra.mxu0 %v960
        %1076 = vmatprep.subr.mxu0 0.0
        %1077 = vmatpush1.msra.mxu0 %v959
        %1078 = vmatprep.subr.mxu0 0.0
        %1079 = vmatpush1.msra.mxu0 %v958
        %1080 = vmatprep.subr.mxu0 0.0
        %1081 = vmatpush1.msra.mxu0 %v957
        %1082 = vmatprep.subr.mxu0 0.0
        %1083 = vmatpush1.msra.mxu0 %v956
        %1084 = vmatprep.subr.mxu0 0.0
        %1085 = vmatpush1.msra.mxu0 %v955
        %1086 = vmatprep.subr.mxu0 0.0
        %1087 = vmatpush1.msra.mxu0 %v954
        %1088 = vmatprep.subr.mxu0 0.0
        %1089 = vmatpush1.msra.mxu0 %v953
        %1090 = vmatprep.subr.mxu0 0.0
        %1091 = vmatpush1.msra.mxu0 %v952
        %1092 = vmatprep.subr.mxu0 0.0
        %1093 = vmatpush1.msra.mxu0 %v951
        %1094 = vmatprep.subr.mxu0 0.0
        %1095 = vmatpush1.msra.mxu0 %v950
        %1096 = vmatprep.subr.mxu0 0.0
        %1097 = vmatpush1.msra.mxu0 %v949
        %1098 = vmatprep.subr.mxu0 0.0
        %1099 = vmatpush1.msra.mxu0 %v948
        %1100 = vmatprep.subr.mxu0 0.0
        %1101 = vmatpush1.msra.mxu0 %v947
        %1102 = vmatprep.subr.mxu0 0.0
        %1103 = vmatpush1.msra.mxu0 %v946
        %1104 = vmatprep.subr.mxu0 0.0
        %1105 = vmatpush1.msra.mxu0 %v945
        %1106 = vmatprep.subr.mxu0 0.0
        %1107 = vmatpush2.msra.mxu0 0.0
        %1108 = vmatprep.subr.mxu0 0.0
        %1109 = vmatpush2.msra.mxu0 0.0
        %1110 = vmatprep.subr.mxu0 0.0
        %1111 = vmatpush2.msra.mxu0 0.0
        %1112 = vmatprep.subr.mxu0 0.0
        %1113 = vmatpush2.msra.mxu0 0.0
        %1114 = vmatprep.subr.mxu0 0.0
        %1115 = vmatpush2.msra.mxu0 0.0
        %1116 = vmatprep.subr.mxu0 0.0
        %1117 = vmatpush2.msra.mxu0 0.0
        %1118 = vmatprep.subr.mxu0 0.0
        %1119 = vmatpush2.msra.mxu0 0.0
        %1120 = vmatprep.subr.mxu0 0.0
        %1121 = vmatpush2.msra.mxu0 0.0
        %1122 = vmatprep.subr.mxu0 0.0
        %1123 = vmatpush2.msra.mxu0 0.0
        %1124 = vmatprep.subr.mxu0 0.0
        %1125 = vmatpush2.msra.mxu0 0.0
        %1126 = vmatprep.subr.mxu0 0.0
        %1127 = vmatpush2.msra.mxu0 0.0
        %1128 = vmatprep.subr.mxu0 0.0
        %1129 = vmatpush2.msra.mxu0 0.0
        %1130 = vmatprep.subr.mxu0 0.0
        %1131 = vmatpush2.msra.mxu0 0.0
        %1132 = vmatprep.subr.mxu0 0.0
        %1133 = vmatpush2.msra.mxu0 0.0
        %1134 = vmatprep.subr.mxu0 0.0
        %1135 = vmatpush2.msra.mxu0 0.0
        %1136 = vmatprep.subr.mxu0 0.0
        %1137 = vmatpush2.msra.mxu0 0.0
        %1138 = vmatprep.mubr.f32.mxu0 0.0
        %1139 = vmatmul.mubr.f32.gmra.mxu0 %v904
        %v1140 = vpop.f32.mrf.mxu0
        %v1141 = vadd.f32 %v1036, %v1140
        %v1142 = vpop.f32.mrf.mxu0
        %1143 = vmatprep.mubr.f32.mxu0 0.0
        %1144 = vmatmul.mubr.f32.gmra.mxu0 %v905
        %v1145 = vpop.f32.mrf.mxu0
        %v1146 = vadd.f32 %v1041, %v1145
        %v1147 = vpop.f32.mrf.mxu0
        %1148 = vmatprep.mubr.f32.mxu0 0.0
        %1149 = vmatmul.mubr.f32.gmra.mxu0 %v906
        %v1150 = vpop.f32.mrf.mxu0
        %v1151 = vadd.f32 %v1046, %v1150
        %v1152 = vpop.f32.mrf.mxu0
        %1153 = vmatprep.mubr.f32.mxu0 0.0
        %1154 = vmatmul.mubr.f32.gmra.mxu0 %v907
        %v1155 = vpop.f32.mrf.mxu0
        %v1156 = vadd.f32 %v1051, %v1155
        %v1157 = vpop.f32.mrf.mxu0
        %1158 = vmatprep.mubr.f32.mxu0 0.0
        %1159 = vmatmul.mubr.f32.gmra.mxu0 %v908
        %v1160 = vpop.f32.mrf.mxu0
        %v1161 = vadd.f32 %v1056, %v1160
        %v1162 = vpop.f32.mrf.mxu0
        %1163 = vmatprep.mubr.f32.mxu0 0.0
        %1164 = vmatmul.mubr.f32.gmra.mxu0 %v909
        %v1165 = vpop.f32.mrf.mxu0
        %v1166 = vadd.f32 %v1061, %v1165
        %v1167 = vpop.f32.mrf.mxu0
        %1168 = vmatprep.mubr.f32.mxu0 0.0
        %1169 = vmatmul.mubr.f32.gmra.mxu0 %v910
        %v1170 = vpop.f32.mrf.mxu0
        %v1171 = vadd.f32 %v1066, %v1170
        %v1172 = vpop.f32.mrf.mxu0
        %1173 = vmatprep.mubr.f32.mxu0 0.0
        %1174 = vmatmul.mubr.f32.gmra.mxu0 %v911
        %v1175 = vpop.f32.mrf.mxu0
        %v1176 = vadd.f32 %v1071, %v1175
        %v1177 = vpop.f32.mrf.mxu0
        %1178 = vdwg.mxu0
        %1179 = vst [vmem:[%s248] sm:$0xff] %v1141
        %1180 = vst [vmem:[%s248 + $0x8] sm:$0xff] %v1146
        %1181 = vst [vmem:[%s248 + $0x10] sm:$0xff] %v1151
        %1182 = vst [vmem:[%s248 + $0x18] sm:$0xff] %v1156
        %1183 = vst [vmem:[%s248 + $0x20] sm:$0xff] %v1161
        %1184 = vst [vmem:[%s248 + $0x28] sm:$0xff] %v1166
        %1185 = vst [vmem:[%s248 + $0x30] sm:$0xff] %v1171
        %1186 = vst [vmem:[%s248 + $0x38] sm:$0xff] %v1176
        %1187 = vst [vmem:[#allocation3 + $0x1] sm:$0xff] %v1141
        %1188 = vst [vmem:[#allocation3 + $0x9] sm:$0xff] %v1146
        %1189 = vst [vmem:[#allocation3 + $0x11] sm:$0xff] %v1151
        %1190 = vst [vmem:[#allocation3 + $0x19] sm:$0xff] %v1156
        %1191 = vst [vmem:[#allocation3 + $0x21] sm:$0xff] %v1161
        %1192 = vst [vmem:[#allocation3 + $0x29] sm:$0xff] %v1166
        %1193 = vst [vmem:[#allocation3 + $0x31] sm:$0xff] %v1171
        %1194 = vst [vmem:[#allocation3 + $0x39] sm:$0xff] %v1176
        %v1195 = vld [vmem:[#allocation3] sm:$0xff]
        %v1196 = vld [vmem:[#allocation3 + $0x8] sm:$0xff]
        %v1197 = vld [vmem:[#allocation3 + $0x10] sm:$0xff]
        %v1198 = vld [vmem:[#allocation3 + $0x18] sm:$0xff]
        %v1199 = vld [vmem:[#allocation3 + $0x20] sm:$0xff]
        %v1200 = vld [vmem:[#allocation3 + $0x28] sm:$0xff]
        %v1201 = vld [vmem:[#allocation3 + $0x30] sm:$0xff]
        %v1202 = vld [vmem:[#allocation3 + $0x38] sm:$0xff]
        %v1203 = vld [vmem:[#allocation3 + $0x1] sm:$0xff]
        %v1204 = vld [vmem:[#allocation3 + $0x9] sm:$0xff]
        %v1205 = vld [vmem:[#allocation3 + $0x11] sm:$0xff]
        %v1206 = vld [vmem:[#allocation3 + $0x19] sm:$0xff]
        %v1207 = vld [vmem:[#allocation3 + $0x21] sm:$0xff]
        %v1208 = vld [vmem:[#allocation3 + $0x29] sm:$0xff]
        %v1209 = vld [vmem:[#allocation3 + $0x31] sm:$0xff]
        %v1210 = vld [vmem:[#allocation3 + $0x39] sm:$0xff]
        %v1211 = vld [vmem:[#allocation3 + $0x2] sm:$0xff]
        %v1212 = vld [vmem:[#allocation3 + $0xa] sm:$0xff]
        %v1213 = vld [vmem:[#allocation3 + $0x12] sm:$0xff]
        %v1214 = vld [vmem:[#allocation3 + $0x1a] sm:$0xff]
        %v1215 = vld [vmem:[#allocation3 + $0x22] sm:$0xff]
        %v1216 = vld [vmem:[#allocation3 + $0x2a] sm:$0xff]
        %v1217 = vld [vmem:[#allocation3 + $0x32] sm:$0xff]
        %v1218 = vld [vmem:[#allocation3 + $0x3a] sm:$0xff]
        %s1219 = scalar_lea.vmem [#allocation7], 1152
        %v1220 = vld [vmem:[%s1219] sm:$0xff]
        %v1221 = vld [vmem:[%s1219 + $0x8] sm:$0xff]
        %v1222 = vld [vmem:[%s1219 + $0x10] sm:$0xff]
        %v1223 = vld [vmem:[%s1219 + $0x18] sm:$0xff]
        %v1224 = vld [vmem:[%s1219 + $0x20] sm:$0xff]
        %v1225 = vld [vmem:[%s1219 + $0x28] sm:$0xff]
        %v1226 = vld [vmem:[%s1219 + $0x30] sm:$0xff]
        %v1227 = vld [vmem:[%s1219 + $0x38] sm:$0xff]
        %v1228 = vld [vmem:[%s1219 + $0x40] sm:$0xff]
        %v1229 = vld [vmem:[%s1219 + $0x48] sm:$0xff]
        %v1230 = vld [vmem:[%s1219 + $0x50] sm:$0xff]
        %v1231 = vld [vmem:[%s1219 + $0x58] sm:$0xff]
        %v1232 = vld [vmem:[%s1219 + $0x60] sm:$0xff]
        %v1233 = vld [vmem:[%s1219 + $0x68] sm:$0xff]
        %v1234 = vld [vmem:[%s1219 + $0x70] sm:$0xff]
        %v1235 = vld [vmem:[%s1219 + $0x78] sm:$0xff]
        %v1236 = vld [vmem:[%s1219 + $0x80] sm:$0xff]
        %v1237 = vld [vmem:[%s1219 + $0x88] sm:$0xff]
        %v1238 = vld [vmem:[%s1219 + $0x90] sm:$0xff]
        %v1239 = vld [vmem:[%s1219 + $0x98] sm:$0xff]
        %v1240 = vld [vmem:[%s1219 + $0xa0] sm:$0xff]
        %v1241 = vld [vmem:[%s1219 + $0xa8] sm:$0xff]
        %v1242 = vld [vmem:[%s1219 + $0xb0] sm:$0xff]
        %v1243 = vld [vmem:[%s1219 + $0xb8] sm:$0xff]
        %v1244 = vld [vmem:[%s1219 + $0xc0] sm:$0xff]
        %v1245 = vld [vmem:[%s1219 + $0xc8] sm:$0xff]
        %v1246 = vld [vmem:[%s1219 + $0xd0] sm:$0xff]
        %v1247 = vld [vmem:[%s1219 + $0xd8] sm:$0xff]
        %v1248 = vld [vmem:[%s1219 + $0xe0] sm:$0xff]
        %v1249 = vld [vmem:[%s1219 + $0xe8] sm:$0xff]
        %v1250 = vld [vmem:[%s1219 + $0xf0] sm:$0xff]
        %v1251 = vld [vmem:[%s1219 + $0xf8] sm:$0xff]
        %v1252 = vld [vmem:[%s1219 + $0x100] sm:$0xff]
        %v1253 = vld [vmem:[%s1219 + $0x108] sm:$0xff]
        %v1254 = vld [vmem:[%s1219 + $0x110] sm:$0xff]
        %v1255 = vld [vmem:[%s1219 + $0x118] sm:$0xff]
        %v1256 = vld [vmem:[%s1219 + $0x120] sm:$0xff]
        %v1257 = vld [vmem:[%s1219 + $0x128] sm:$0xff]
        %v1258 = vld [vmem:[%s1219 + $0x130] sm:$0xff]
        %v1259 = vld [vmem:[%s1219 + $0x138] sm:$0xff]
        %v1260 = vld [vmem:[%s1219 + $0x140] sm:$0xff]
        %v1261 = vld [vmem:[%s1219 + $0x148] sm:$0xff]
        %v1262 = vld [vmem:[%s1219 + $0x150] sm:$0xff]
        %v1263 = vld [vmem:[%s1219 + $0x158] sm:$0xff]
        %v1264 = vld [vmem:[%s1219 + $0x160] sm:$0xff]
        %v1265 = vld [vmem:[%s1219 + $0x168] sm:$0xff]
        %v1266 = vld [vmem:[%s1219 + $0x170] sm:$0xff]
        %v1267 = vld [vmem:[%s1219 + $0x178] sm:$0xff]
        %s1268 = scalar_lea.vmem [#allocation9], 3
        %v1269 = vld [vmem:[%s1268] sm:$0x1]
        %v1271 = vlaneseq
        %v1272 = vshrl.u32 %v1271, 7
        %v1273 = vsub.s32 0, %v1272
        %v1274 = vrot.slane %v1269, %v1273
        %1276 = vmatprep.subr.mxu0 0.0
        %1277 = vmatpush1.msra.mxu0 %v1235
        %1278 = vmatprep.subr.mxu0 0.0
        %1279 = vmatpush1.msra.mxu0 %v1234
        %1280 = vmatprep.subr.mxu0 0.0
        %1281 = vmatpush1.msra.mxu0 %v1233
        %1282 = vmatprep.subr.mxu0 0.0
        %1283 = vmatpush1.msra.mxu0 %v1232
        %1284 = vmatprep.subr.mxu0 0.0
        %1285 = vmatpush1.msra.mxu0 %v1231
        %1286 = vmatprep.subr.mxu0 0.0
        %1287 = vmatpush1.msra.mxu0 %v1230
        %1288 = vmatprep.subr.mxu0 0.0
        %1289 = vmatpush1.msra.mxu0 %v1229
        %1290 = vmatprep.subr.mxu0 0.0
        %1291 = vmatpush1.msra.mxu0 %v1228
        %1292 = vmatprep.subr.mxu0 0.0
        %1293 = vmatpush1.msra.mxu0 %v1227
        %1294 = vmatprep.subr.mxu0 0.0
        %1295 = vmatpush1.msra.mxu0 %v1226
        %1296 = vmatprep.subr.mxu0 0.0
        %1297 = vmatpush1.msra.mxu0 %v1225
        %1298 = vmatprep.subr.mxu0 0.0
        %1299 = vmatpush1.msra.mxu0 %v1224
        %1300 = vmatprep.subr.mxu0 0.0
        %1301 = vmatpush1.msra.mxu0 %v1223
        %1302 = vmatprep.subr.mxu0 0.0
        %1303 = vmatpush1.msra.mxu0 %v1222
        %1304 = vmatprep.subr.mxu0 0.0
        %1305 = vmatpush1.msra.mxu0 %v1221
        %1306 = vmatprep.subr.mxu0 0.0
        %1307 = vmatpush1.msra.mxu0 %v1220
        %1308 = vmatprep.subr.mxu0 0.0
        %1309 = vmatpush2.msra.mxu0 %v1251
        %1310 = vmatprep.subr.mxu0 0.0
        %1311 = vmatpush2.msra.mxu0 %v1250
        %1312 = vmatprep.subr.mxu0 0.0
        %1313 = vmatpush2.msra.mxu0 %v1249
        %1314 = vmatprep.subr.mxu0 0.0
        %1315 = vmatpush2.msra.mxu0 %v1248
        %1316 = vmatprep.subr.mxu0 0.0
        %1317 = vmatpush2.msra.mxu0 %v1247
        %1318 = vmatprep.subr.mxu0 0.0
        %1319 = vmatpush2.msra.mxu0 %v1246
        %1320 = vmatprep.subr.mxu0 0.0
        %1321 = vmatpush2.msra.mxu0 %v1245
        %1322 = vmatprep.subr.mxu0 0.0
        %1323 = vmatpush2.msra.mxu0 %v1244
        %1324 = vmatprep.subr.mxu0 0.0
        %1325 = vmatpush2.msra.mxu0 %v1243
        %1326 = vmatprep.subr.mxu0 0.0
        %1327 = vmatpush2.msra.mxu0 %v1242
        %1328 = vmatprep.subr.mxu0 0.0
        %1329 = vmatpush2.msra.mxu0 %v1241
        %1330 = vmatprep.subr.mxu0 0.0
        %1331 = vmatpush2.msra.mxu0 %v1240
        %1332 = vmatprep.subr.mxu0 0.0
        %1333 = vmatpush2.msra.mxu0 %v1239
        %1334 = vmatprep.subr.mxu0 0.0
        %1335 = vmatpush2.msra.mxu0 %v1238
        %1336 = vmatprep.subr.mxu0 0.0
        %1337 = vmatpush2.msra.mxu0 %v1237
        %1338 = vmatprep.subr.mxu0 0.0
        %1339 = vmatpush2.msra.mxu0 %v1236
        %1340 = vmatprep.mubr.f32.mxu0 %v1203
        %1341 = vmatmul.mubr.f32.gmra.mxu0 %v1195
        %v1342 = vpop.f32.mrf.mxu0
        %v1343 = vadd.f32 %v1274, %v1342
        %v1344 = vpop.f32.mrf.mxu0
        %1345 = vmatprep.mubr.f32.mxu0 %v1204
        %1346 = vmatmul.mubr.f32.gmra.mxu0 %v1196
        %v1347 = vpop.f32.mrf.mxu0
        %v1348 = vadd.f32 %v1274, %v1347
        %v1349 = vpop.f32.mrf.mxu0
        %1350 = vmatprep.mubr.f32.mxu0 %v1205
        %1351 = vmatmul.mubr.f32.gmra.mxu0 %v1197
        %v1352 = vpop.f32.mrf.mxu0
        %v1353 = vadd.f32 %v1274, %v1352
        %v1354 = vpop.f32.mrf.mxu0
        %1355 = vmatprep.mubr.f32.mxu0 %v1206
        %1356 = vmatmul.mubr.f32.gmra.mxu0 %v1198
        %v1357 = vpop.f32.mrf.mxu0
        %v1358 = vadd.f32 %v1274, %v1357
        %v1359 = vpop.f32.mrf.mxu0
        %1360 = vmatprep.mubr.f32.mxu0 %v1207
        %1361 = vmatmul.mubr.f32.gmra.mxu0 %v1199
        %v1362 = vpop.f32.mrf.mxu0
        %v1363 = vadd.f32 %v1274, %v1362
        %v1364 = vpop.f32.mrf.mxu0
        %1365 = vmatprep.mubr.f32.mxu0 %v1208
        %1366 = vmatmul.mubr.f32.gmra.mxu0 %v1200
        %v1367 = vpop.f32.mrf.mxu0
        %v1368 = vadd.f32 %v1274, %v1367
        %v1369 = vpop.f32.mrf.mxu0
        %1370 = vmatprep.mubr.f32.mxu0 %v1209
        %1371 = vmatmul.mubr.f32.gmra.mxu0 %v1201
        %v1372 = vpop.f32.mrf.mxu0
        %v1373 = vadd.f32 %v1274, %v1372
        %v1374 = vpop.f32.mrf.mxu0
        %1375 = vmatprep.mubr.f32.mxu0 %v1210
        %1376 = vmatmul.mubr.f32.gmra.mxu0 %v1202
        %v1377 = vpop.f32.mrf.mxu0
        %v1378 = vadd.f32 %v1274, %v1377
        %v1379 = vpop.f32.mrf.mxu0
        %1380 = vdwg.mxu0
        %1381 = vmatprep.subr.mxu0 0.0
        %1382 = vmatpush1.msra.mxu0 %v1267
        %1383 = vmatprep.subr.mxu0 0.0
        %1384 = vmatpush1.msra.mxu0 %v1266
        %1385 = vmatprep.subr.mxu0 0.0
        %1386 = vmatpush1.msra.mxu0 %v1265
        %1387 = vmatprep.subr.mxu0 0.0
        %1388 = vmatpush1.msra.mxu0 %v1264
        %1389 = vmatprep.subr.mxu0 0.0
        %1390 = vmatpush1.msra.mxu0 %v1263
        %1391 = vmatprep.subr.mxu0 0.0
        %1392 = vmatpush1.msra.mxu0 %v1262
        %1393 = vmatprep.subr.mxu0 0.0
        %1394 = vmatpush1.msra.mxu0 %v1261
        %1395 = vmatprep.subr.mxu0 0.0
        %1396 = vmatpush1.msra.mxu0 %v1260
        %1397 = vmatprep.subr.mxu0 0.0
        %1398 = vmatpush1.msra.mxu0 %v1259
        %1399 = vmatprep.subr.mxu0 0.0
        %1400 = vmatpush1.msra.mxu0 %v1258
        %1401 = vmatprep.subr.mxu0 0.0
        %1402 = vmatpush1.msra.mxu0 %v1257
        %1403 = vmatprep.subr.mxu0 0.0
        %1404 = vmatpush1.msra.mxu0 %v1256
        %1405 = vmatprep.subr.mxu0 0.0
        %1406 = vmatpush1.msra.mxu0 %v1255
        %1407 = vmatprep.subr.mxu0 0.0
        %1408 = vmatpush1.msra.mxu0 %v1254
        %1409 = vmatprep.subr.mxu0 0.0
        %1410 = vmatpush1.msra.mxu0 %v1253
        %1411 = vmatprep.subr.mxu0 0.0
        %1412 = vmatpush1.msra.mxu0 %v1252
        %1413 = vmatprep.subr.mxu0 0.0
        %1414 = vmatpush2.msra.mxu0 0.0
        %1415 = vmatprep.subr.mxu0 0.0
        %1416 = vmatpush2.msra.mxu0 0.0
        %1417 = vmatprep.subr.mxu0 0.0
        %1418 = vmatpush2.msra.mxu0 0.0
        %1419 = vmatprep.subr.mxu0 0.0
        %1420 = vmatpush2.msra.mxu0 0.0
        %1421 = vmatprep.subr.mxu0 0.0
        %1422 = vmatpush2.msra.mxu0 0.0
        %1423 = vmatprep.subr.mxu0 0.0
        %1424 = vmatpush2.msra.mxu0 0.0
        %1425 = vmatprep.subr.mxu0 0.0
        %1426 = vmatpush2.msra.mxu0 0.0
        %1427 = vmatprep.subr.mxu0 0.0
        %1428 = vmatpush2.msra.mxu0 0.0
        %1429 = vmatprep.subr.mxu0 0.0
        %1430 = vmatpush2.msra.mxu0 0.0
        %1431 = vmatprep.subr.mxu0 0.0
        %1432 = vmatpush2.msra.mxu0 0.0
        %1433 = vmatprep.subr.mxu0 0.0
        %1434 = vmatpush2.msra.mxu0 0.0
        %1435 = vmatprep.subr.mxu0 0.0
        %1436 = vmatpush2.msra.mxu0 0.0
        %1437 = vmatprep.subr.mxu0 0.0
        %1438 = vmatpush2.msra.mxu0 0.0
        %1439 = vmatprep.subr.mxu0 0.0
        %1440 = vmatpush2.msra.mxu0 0.0
        %1441 = vmatprep.subr.mxu0 0.0
        %1442 = vmatpush2.msra.mxu0 0.0
        %1443 = vmatprep.subr.mxu0 0.0
        %1444 = vmatpush2.msra.mxu0 0.0
        %1445 = vmatprep.mubr.f32.mxu0 0.0
        %1446 = vmatmul.mubr.f32.gmra.mxu0 %v1211
        %v1447 = vpop.f32.mrf.mxu0
        %v1448 = vadd.f32 %v1343, %v1447
        %v1449 = vpop.f32.mrf.mxu0
        %1450 = vmatprep.mubr.f32.mxu0 0.0
        %1451 = vmatmul.mubr.f32.gmra.mxu0 %v1212
        %v1452 = vpop.f32.mrf.mxu0
        %v1453 = vadd.f32 %v1348, %v1452
        %v1454 = vpop.f32.mrf.mxu0
        %1455 = vmatprep.mubr.f32.mxu0 0.0
        %1456 = vmatmul.mubr.f32.gmra.mxu0 %v1213
        %v1457 = vpop.f32.mrf.mxu0
        %v1458 = vadd.f32 %v1353, %v1457
        %v1459 = vpop.f32.mrf.mxu0
        %1460 = vmatprep.mubr.f32.mxu0 0.0
        %1461 = vmatmul.mubr.f32.gmra.mxu0 %v1214
        %v1462 = vpop.f32.mrf.mxu0
        %v1463 = vadd.f32 %v1358, %v1462
        %v1464 = vpop.f32.mrf.mxu0
        %1465 = vmatprep.mubr.f32.mxu0 0.0
        %1466 = vmatmul.mubr.f32.gmra.mxu0 %v1215
        %v1467 = vpop.f32.mrf.mxu0
        %v1468 = vadd.f32 %v1363, %v1467
        %v1469 = vpop.f32.mrf.mxu0
        %1470 = vmatprep.mubr.f32.mxu0 0.0
        %1471 = vmatmul.mubr.f32.gmra.mxu0 %v1216
        %v1472 = vpop.f32.mrf.mxu0
        %v1473 = vadd.f32 %v1368, %v1472
        %v1474 = vpop.f32.mrf.mxu0
        %1475 = vmatprep.mubr.f32.mxu0 0.0
        %1476 = vmatmul.mubr.f32.gmra.mxu0 %v1217
        %v1477 = vpop.f32.mrf.mxu0
        %v1478 = vadd.f32 %v1373, %v1477
        %v1479 = vpop.f32.mrf.mxu0
        %1480 = vmatprep.mubr.f32.mxu0 0.0
        %1481 = vmatmul.mubr.f32.gmra.mxu0 %v1218
        %v1482 = vpop.f32.mrf.mxu0
        %v1483 = vadd.f32 %v1378, %v1482
        %v1484 = vpop.f32.mrf.mxu0
        %1485 = vdwg.mxu0
        %v1486 = vmax.f32 %v1448, 0.0
        %v1487 = vmax.f32 %v1453, 0.0
        %v1488 = vmax.f32 %v1458, 0.0
        %v1489 = vmax.f32 %v1463, 0.0
        %v1490 = vmax.f32 %v1468, 0.0
        %v1491 = vmax.f32 %v1473, 0.0
        %v1492 = vmax.f32 %v1478, 0.0
        %v1493 = vmax.f32 %v1483, 0.0
        %1494 = vst [vmem:[#allocation2 + $0x1] sm:$0xff] %v1486
        %1495 = vst [vmem:[#allocation2 + $0x9] sm:$0xff] %v1487
        %1496 = vst [vmem:[#allocation2 + $0x11] sm:$0xff] %v1488
        %1497 = vst [vmem:[#allocation2 + $0x19] sm:$0xff] %v1489
        %1498 = vst [vmem:[#allocation2 + $0x21] sm:$0xff] %v1490
        %1499 = vst [vmem:[#allocation2 + $0x29] sm:$0xff] %v1491
        %1500 = vst [vmem:[#allocation2 + $0x31] sm:$0xff] %v1492
        %1501 = vst [vmem:[#allocation2 + $0x39] sm:$0xff] %v1493
        %v1502 = vld [vmem:[#allocation2] sm:$0xff]
        %v1503 = vld [vmem:[#allocation2 + $0x8] sm:$0xff]
        %v1504 = vld [vmem:[#allocation2 + $0x10] sm:$0xff]
        %v1505 = vld [vmem:[#allocation2 + $0x18] sm:$0xff]
        %v1506 = vld [vmem:[#allocation2 + $0x20] sm:$0xff]
        %v1507 = vld [vmem:[#allocation2 + $0x28] sm:$0xff]
        %v1508 = vld [vmem:[#allocation2 + $0x30] sm:$0xff]
        %v1509 = vld [vmem:[#allocation2 + $0x38] sm:$0xff]
        %v1510 = vld [vmem:[#allocation2 + $0x1] sm:$0xff]
        %v1511 = vld [vmem:[#allocation2 + $0x9] sm:$0xff]
        %v1512 = vld [vmem:[#allocation2 + $0x11] sm:$0xff]
        %v1513 = vld [vmem:[#allocation2 + $0x19] sm:$0xff]
        %v1514 = vld [vmem:[#allocation2 + $0x21] sm:$0xff]
        %v1515 = vld [vmem:[#allocation2 + $0x29] sm:$0xff]
        %v1516 = vld [vmem:[#allocation2 + $0x31] sm:$0xff]
        %v1517 = vld [vmem:[#allocation2 + $0x39] sm:$0xff]
        %v1518 = vld [vmem:[#allocation2 + $0x2] sm:$0xff]
        %v1519 = vld [vmem:[#allocation2 + $0xa] sm:$0xff]
        %v1520 = vld [vmem:[#allocation2 + $0x12] sm:$0xff]
        %v1521 = vld [vmem:[#allocation2 + $0x1a] sm:$0xff]
        %v1522 = vld [vmem:[#allocation2 + $0x22] sm:$0xff]
        %v1523 = vld [vmem:[#allocation2 + $0x2a] sm:$0xff]
        %v1524 = vld [vmem:[#allocation2 + $0x32] sm:$0xff]
        %v1525 = vld [vmem:[#allocation2 + $0x3a] sm:$0xff]
        %s1526 = scalar_lea.vmem [#allocation7], 1536
        %v1527 = vld [vmem:[%s1526] sm:$0xff]
        %v1528 = vld [vmem:[%s1526 + $0x8] sm:$0xff]
        %v1529 = vld [vmem:[%s1526 + $0x10] sm:$0xff]
        %v1530 = vld [vmem:[%s1526 + $0x18] sm:$0xff]
        %v1531 = vld [vmem:[%s1526 + $0x20] sm:$0xff]
        %v1532 = vld [vmem:[%s1526 + $0x28] sm:$0xff]
        %v1533 = vld [vmem:[%s1526 + $0x30] sm:$0xff]
        %v1534 = vld [vmem:[%s1526 + $0x38] sm:$0xff]
        %v1535 = vld [vmem:[%s1526 + $0x40] sm:$0xff]
        %v1536 = vld [vmem:[%s1526 + $0x48] sm:$0xff]
        %v1537 = vld [vmem:[%s1526 + $0x50] sm:$0xff]
        %v1538 = vld [vmem:[%s1526 + $0x58] sm:$0xff]
        %v1539 = vld [vmem:[%s1526 + $0x60] sm:$0xff]
        %v1540 = vld [vmem:[%s1526 + $0x68] sm:$0xff]
        %v1541 = vld [vmem:[%s1526 + $0x70] sm:$0xff]
        %v1542 = vld [vmem:[%s1526 + $0x78] sm:$0xff]
        %v1543 = vld [vmem:[%s1526 + $0x80] sm:$0xff]
        %v1544 = vld [vmem:[%s1526 + $0x88] sm:$0xff]
        %v1545 = vld [vmem:[%s1526 + $0x90] sm:$0xff]
        %v1546 = vld [vmem:[%s1526 + $0x98] sm:$0xff]
        %v1547 = vld [vmem:[%s1526 + $0xa0] sm:$0xff]
        %v1548 = vld [vmem:[%s1526 + $0xa8] sm:$0xff]
        %v1549 = vld [vmem:[%s1526 + $0xb0] sm:$0xff]
        %v1550 = vld [vmem:[%s1526 + $0xb8] sm:$0xff]
        %v1551 = vld [vmem:[%s1526 + $0xc0] sm:$0xff]
        %v1552 = vld [vmem:[%s1526 + $0xc8] sm:$0xff]
        %v1553 = vld [vmem:[%s1526 + $0xd0] sm:$0xff]
        %v1554 = vld [vmem:[%s1526 + $0xd8] sm:$0xff]
        %v1555 = vld [vmem:[%s1526 + $0xe0] sm:$0xff]
        %v1556 = vld [vmem:[%s1526 + $0xe8] sm:$0xff]
        %v1557 = vld [vmem:[%s1526 + $0xf0] sm:$0xff]
        %v1558 = vld [vmem:[%s1526 + $0xf8] sm:$0xff]
        %v1559 = vld [vmem:[%s1526 + $0x100] sm:$0xff]
        %v1560 = vld [vmem:[%s1526 + $0x108] sm:$0xff]
        %v1561 = vld [vmem:[%s1526 + $0x110] sm:$0xff]
        %v1562 = vld [vmem:[%s1526 + $0x118] sm:$0xff]
        %v1563 = vld [vmem:[%s1526 + $0x120] sm:$0xff]
        %v1564 = vld [vmem:[%s1526 + $0x128] sm:$0xff]
        %v1565 = vld [vmem:[%s1526 + $0x130] sm:$0xff]
        %v1566 = vld [vmem:[%s1526 + $0x138] sm:$0xff]
        %v1567 = vld [vmem:[%s1526 + $0x140] sm:$0xff]
        %v1568 = vld [vmem:[%s1526 + $0x148] sm:$0xff]
        %v1569 = vld [vmem:[%s1526 + $0x150] sm:$0xff]
        %v1570 = vld [vmem:[%s1526 + $0x158] sm:$0xff]
        %v1571 = vld [vmem:[%s1526 + $0x160] sm:$0xff]
        %v1572 = vld [vmem:[%s1526 + $0x168] sm:$0xff]
        %v1573 = vld [vmem:[%s1526 + $0x170] sm:$0xff]
        %v1574 = vld [vmem:[%s1526 + $0x178] sm:$0xff]
        %s1575 = scalar_lea.vmem [#allocation9], 4
        %v1576 = vld [vmem:[%s1575] sm:$0x1]
        %v1578 = vlaneseq
        %v1579 = vshrl.u32 %v1578, 7
        %v1580 = vsub.s32 0, %v1579
        %v1581 = vrot.slane %v1576, %v1580
        %1583 = vmatprep.subr.mxu0 0.0
        %1584 = vmatpush1.msra.mxu0 %v1542
        %1585 = vmatprep.subr.mxu0 0.0
        %1586 = vmatpush1.msra.mxu0 %v1541
        %1587 = vmatprep.subr.mxu0 0.0
        %1588 = vmatpush1.msra.mxu0 %v1540
        %1589 = vmatprep.subr.mxu0 0.0
        %1590 = vmatpush1.msra.mxu0 %v1539
        %1591 = vmatprep.subr.mxu0 0.0
        %1592 = vmatpush1.msra.mxu0 %v1538
        %1593 = vmatprep.subr.mxu0 0.0
        %1594 = vmatpush1.msra.mxu0 %v1537
        %1595 = vmatprep.subr.mxu0 0.0
        %1596 = vmatpush1.msra.mxu0 %v1536
        %1597 = vmatprep.subr.mxu0 0.0
        %1598 = vmatpush1.msra.mxu0 %v1535
        %1599 = vmatprep.subr.mxu0 0.0
        %1600 = vmatpush1.msra.mxu0 %v1534
        %1601 = vmatprep.subr.mxu0 0.0
        %1602 = vmatpush1.msra.mxu0 %v1533
        %1603 = vmatprep.subr.mxu0 0.0
        %1604 = vmatpush1.msra.mxu0 %v1532
        %1605 = vmatprep.subr.mxu0 0.0
        %1606 = vmatpush1.msra.mxu0 %v1531
        %1607 = vmatprep.subr.mxu0 0.0
        %1608 = vmatpush1.msra.mxu0 %v1530
        %1609 = vmatprep.subr.mxu0 0.0
        %1610 = vmatpush1.msra.mxu0 %v1529
        %1611 = vmatprep.subr.mxu0 0.0
        %1612 = vmatpush1.msra.mxu0 %v1528
        %1613 = vmatprep.subr.mxu0 0.0
        %1614 = vmatpush1.msra.mxu0 %v1527
        %1615 = vmatprep.subr.mxu0 0.0
        %1616 = vmatpush2.msra.mxu0 %v1558
        %1617 = vmatprep.subr.mxu0 0.0
        %1618 = vmatpush2.msra.mxu0 %v1557
        %1619 = vmatprep.subr.mxu0 0.0
        %1620 = vmatpush2.msra.mxu0 %v1556
        %1621 = vmatprep.subr.mxu0 0.0
        %1622 = vmatpush2.msra.mxu0 %v1555
        %1623 = vmatprep.subr.mxu0 0.0
        %1624 = vmatpush2.msra.mxu0 %v1554
        %1625 = vmatprep.subr.mxu0 0.0
        %1626 = vmatpush2.msra.mxu0 %v1553
        %1627 = vmatprep.subr.mxu0 0.0
        %1628 = vmatpush2.msra.mxu0 %v1552
        %1629 = vmatprep.subr.mxu0 0.0
        %1630 = vmatpush2.msra.mxu0 %v1551
        %1631 = vmatprep.subr.mxu0 0.0
        %1632 = vmatpush2.msra.mxu0 %v1550
        %1633 = vmatprep.subr.mxu0 0.0
        %1634 = vmatpush2.msra.mxu0 %v1549
        %1635 = vmatprep.subr.mxu0 0.0
        %1636 = vmatpush2.msra.mxu0 %v1548
        %1637 = vmatprep.subr.mxu0 0.0
        %1638 = vmatpush2.msra.mxu0 %v1547
        %1639 = vmatprep.subr.mxu0 0.0
        %1640 = vmatpush2.msra.mxu0 %v1546
        %1641 = vmatprep.subr.mxu0 0.0
        %1642 = vmatpush2.msra.mxu0 %v1545
        %1643 = vmatprep.subr.mxu0 0.0
        %1644 = vmatpush2.msra.mxu0 %v1544
        %1645 = vmatprep.subr.mxu0 0.0
        %1646 = vmatpush2.msra.mxu0 %v1543
        %1647 = vmatprep.mubr.f32.mxu0 %v1510
        %1648 = vmatmul.mubr.f32.gmra.mxu0 %v1502
        %v1649 = vpop.f32.mrf.mxu0
        %v1650 = vadd.f32 %v1581, %v1649
        %v1651 = vpop.f32.mrf.mxu0
        %1652 = vmatprep.mubr.f32.mxu0 %v1511
        %1653 = vmatmul.mubr.f32.gmra.mxu0 %v1503
        %v1654 = vpop.f32.mrf.mxu0
        %v1655 = vadd.f32 %v1581, %v1654
        %v1656 = vpop.f32.mrf.mxu0
        %1657 = vmatprep.mubr.f32.mxu0 %v1512
        %1658 = vmatmul.mubr.f32.gmra.mxu0 %v1504
        %v1659 = vpop.f32.mrf.mxu0
        %v1660 = vadd.f32 %v1581, %v1659
        %v1661 = vpop.f32.mrf.mxu0
        %1662 = vmatprep.mubr.f32.mxu0 %v1513
        %1663 = vmatmul.mubr.f32.gmra.mxu0 %v1505
        %v1664 = vpop.f32.mrf.mxu0
        %v1665 = vadd.f32 %v1581, %v1664
        %v1666 = vpop.f32.mrf.mxu0
        %1667 = vmatprep.mubr.f32.mxu0 %v1514
        %1668 = vmatmul.mubr.f32.gmra.mxu0 %v1506
        %v1669 = vpop.f32.mrf.mxu0
        %v1670 = vadd.f32 %v1581, %v1669
        %v1671 = vpop.f32.mrf.mxu0
        %1672 = vmatprep.mubr.f32.mxu0 %v1515
        %1673 = vmatmul.mubr.f32.gmra.mxu0 %v1507
        %v1674 = vpop.f32.mrf.mxu0
        %v1675 = vadd.f32 %v1581, %v1674
        %v1676 = vpop.f32.mrf.mxu0
        %1677 = vmatprep.mubr.f32.mxu0 %v1516
        %1678 = vmatmul.mubr.f32.gmra.mxu0 %v1508
        %v1679 = vpop.f32.mrf.mxu0
        %v1680 = vadd.f32 %v1581, %v1679
        %v1681 = vpop.f32.mrf.mxu0
        %1682 = vmatprep.mubr.f32.mxu0 %v1517
        %1683 = vmatmul.mubr.f32.gmra.mxu0 %v1509
        %v1684 = vpop.f32.mrf.mxu0
        %v1685 = vadd.f32 %v1581, %v1684
        %v1686 = vpop.f32.mrf.mxu0
        %1687 = vdwg.mxu0
        %1688 = vmatprep.subr.mxu0 0.0
        %1689 = vmatpush1.msra.mxu0 %v1574
        %1690 = vmatprep.subr.mxu0 0.0
        %1691 = vmatpush1.msra.mxu0 %v1573
        %1692 = vmatprep.subr.mxu0 0.0
        %1693 = vmatpush1.msra.mxu0 %v1572
        %1694 = vmatprep.subr.mxu0 0.0
        %1695 = vmatpush1.msra.mxu0 %v1571
        %1696 = vmatprep.subr.mxu0 0.0
        %1697 = vmatpush1.msra.mxu0 %v1570
        %1698 = vmatprep.subr.mxu0 0.0
        %1699 = vmatpush1.msra.mxu0 %v1569
        %1700 = vmatprep.subr.mxu0 0.0
        %1701 = vmatpush1.msra.mxu0 %v1568
        %1702 = vmatprep.subr.mxu0 0.0
        %1703 = vmatpush1.msra.mxu0 %v1567
        %1704 = vmatprep.subr.mxu0 0.0
        %1705 = vmatpush1.msra.mxu0 %v1566
        %1706 = vmatprep.subr.mxu0 0.0
        %1707 = vmatpush1.msra.mxu0 %v1565
        %1708 = vmatprep.subr.mxu0 0.0
        %1709 = vmatpush1.msra.mxu0 %v1564
        %1710 = vmatprep.subr.mxu0 0.0
        %1711 = vmatpush1.msra.mxu0 %v1563
        %1712 = vmatprep.subr.mxu0 0.0
        %1713 = vmatpush1.msra.mxu0 %v1562
        %1714 = vmatprep.subr.mxu0 0.0
        %1715 = vmatpush1.msra.mxu0 %v1561
        %1716 = vmatprep.subr.mxu0 0.0
        %1717 = vmatpush1.msra.mxu0 %v1560
        %1718 = vmatprep.subr.mxu0 0.0
        %1719 = vmatpush1.msra.mxu0 %v1559
        %1720 = vmatprep.subr.mxu0 0.0
        %1721 = vmatpush2.msra.mxu0 0.0
        %1722 = vmatprep.subr.mxu0 0.0
        %1723 = vmatpush2.msra.mxu0 0.0
        %1724 = vmatprep.subr.mxu0 0.0
        %1725 = vmatpush2.msra.mxu0 0.0
        %1726 = vmatprep.subr.mxu0 0.0
        %1727 = vmatpush2.msra.mxu0 0.0
        %1728 = vmatprep.subr.mxu0 0.0
        %1729 = vmatpush2.msra.mxu0 0.0
        %1730 = vmatprep.subr.mxu0 0.0
        %1731 = vmatpush2.msra.mxu0 0.0
        %1732 = vmatprep.subr.mxu0 0.0
        %1733 = vmatpush2.msra.mxu0 0.0
        %1734 = vmatprep.subr.mxu0 0.0
        %1735 = vmatpush2.msra.mxu0 0.0
        %1736 = vmatprep.subr.mxu0 0.0
        %1737 = vmatpush2.msra.mxu0 0.0
        %1738 = vmatprep.subr.mxu0 0.0
        %1739 = vmatpush2.msra.mxu0 0.0
        %1740 = vmatprep.subr.mxu0 0.0
        %1741 = vmatpush2.msra.mxu0 0.0
        %1742 = vmatprep.subr.mxu0 0.0
        %1743 = vmatpush2.msra.mxu0 0.0
        %1744 = vmatprep.subr.mxu0 0.0
        %1745 = vmatpush2.msra.mxu0 0.0
        %1746 = vmatprep.subr.mxu0 0.0
        %1747 = vmatpush2.msra.mxu0 0.0
        %1748 = vmatprep.subr.mxu0 0.0
        %1749 = vmatpush2.msra.mxu0 0.0
        %1750 = vmatprep.subr.mxu0 0.0
        %1751 = vmatpush2.msra.mxu0 0.0
        %1752 = vmatprep.mubr.f32.mxu0 0.0
        %1753 = vmatmul.mubr.f32.gmra.mxu0 %v1518
        %v1754 = vpop.f32.mrf.mxu0
        %v1755 = vadd.f32 %v1650, %v1754
        %v1756 = vpop.f32.mrf.mxu0
        %1757 = vmatprep.mubr.f32.mxu0 0.0
        %1758 = vmatmul.mubr.f32.gmra.mxu0 %v1519
        %v1759 = vpop.f32.mrf.mxu0
        %v1760 = vadd.f32 %v1655, %v1759
        %v1761 = vpop.f32.mrf.mxu0
        %1762 = vmatprep.mubr.f32.mxu0 0.0
        %1763 = vmatmul.mubr.f32.gmra.mxu0 %v1520
        %v1764 = vpop.f32.mrf.mxu0
        %v1765 = vadd.f32 %v1660, %v1764
        %v1766 = vpop.f32.mrf.mxu0
        %1767 = vmatprep.mubr.f32.mxu0 0.0
        %1768 = vmatmul.mubr.f32.gmra.mxu0 %v1521
        %v1769 = vpop.f32.mrf.mxu0
        %v1770 = vadd.f32 %v1665, %v1769
        %v1771 = vpop.f32.mrf.mxu0
        %1772 = vmatprep.mubr.f32.mxu0 0.0
        %1773 = vmatmul.mubr.f32.gmra.mxu0 %v1522
        %v1774 = vpop.f32.mrf.mxu0
        %v1775 = vadd.f32 %v1670, %v1774
        %v1776 = vpop.f32.mrf.mxu0
        %1777 = vmatprep.mubr.f32.mxu0 0.0
        %1778 = vmatmul.mubr.f32.gmra.mxu0 %v1523
        %v1779 = vpop.f32.mrf.mxu0
        %v1780 = vadd.f32 %v1675, %v1779
        %v1781 = vpop.f32.mrf.mxu0
        %1782 = vmatprep.mubr.f32.mxu0 0.0
        %1783 = vmatmul.mubr.f32.gmra.mxu0 %v1524
        %v1784 = vpop.f32.mrf.mxu0
        %v1785 = vadd.f32 %v1680, %v1784
        %v1786 = vpop.f32.mrf.mxu0
        %1787 = vmatprep.mubr.f32.mxu0 0.0
        %1788 = vmatmul.mubr.f32.gmra.mxu0 %v1525
        %v1789 = vpop.f32.mrf.mxu0
        %v1790 = vadd.f32 %v1685, %v1789
        %v1791 = vpop.f32.mrf.mxu0
        %1792 = vdwg.mxu0
        %1793 = vst [vmem:[%s255] sm:$0xff] %v1755
        %1794 = vst [vmem:[%s255 + $0x8] sm:$0xff] %v1760
        %1795 = vst [vmem:[%s255 + $0x10] sm:$0xff] %v1765
        %1796 = vst [vmem:[%s255 + $0x18] sm:$0xff] %v1770
        %1797 = vst [vmem:[%s255 + $0x20] sm:$0xff] %v1775
        %1798 = vst [vmem:[%s255 + $0x28] sm:$0xff] %v1780
        %1799 = vst [vmem:[%s255 + $0x30] sm:$0xff] %v1785
        %1800 = vst [vmem:[%s255 + $0x38] sm:$0xff] %v1790
        %s1801 = sand.u32 %s102, 1
        %s1802 = scalar_lea.sflag [#allocation6], %s1801
        %s1803 = sand.u32 %s102, 1
        %s1804 = smul.addr %s1803, 64
        %s1805 = scalar_lea.vmem [#allocation10], %s1804
        %s1806 = sand.u32 %s128, 1
        %s1807 = scalar_lea.sflag [#allocation12], %s1806
        %s1808 = sand.u32 %s128, 1
        %s1809 = smul.addr %s1808, 64
        %s1810 = scalar_lea.vmem [#allocation11], %s1809
        // Predicated region
        $region45: #{tpu_custom_call.1} parent=31 // pred_check
          %p1811 = pneg %p112
        $region46: #{tpu_custom_call.1} parent=31 // pred_check_branch
          %1813 = sbr.rel (%p1811) target = $region48
        $region47: #{tpu_custom_call.1} parent=31 // pred_region
          %s1815 = ssub.s32 1024, 1024
          %1816 = vsyncadd %s1802, %s1815
          %s1817 = smul.addr %s26, 8
          %s1818 = smul.addr %s1817, 128
          %s1819 = scalar_lea.hbm %s3, %s1818
          %s1820 = sshll.u32 %s1805, 4
          %s1821 = int_to_ptr.vmem [resolvable:$true] %s1820
          %1826 = dma.vmem_to_hbm [thread:$0]  %s1821, 1024, %s1819, %s1802, 128, 128, 8
        $region48: #{tpu_custom_call.1} parent=31 // pred_fallthru
          _
        // Predicated region
        $region49: #{tpu_custom_call.1} parent=31 // pred_check
          %p1827 = pneg %p138
        $region50: #{tpu_custom_call.1} parent=31 // pred_check_branch
          %1829 = sbr.rel (%p1827) target = $region52
        $region51: #{tpu_custom_call.1} parent=31 // pred_region
          %s1831 = ssub.s32 1024, 1024
          %1832 = vsyncadd %s1807, %s1831
          %s1833 = smul.addr %s26, 8
          %s1834 = smul.addr %s1833, 128
          %s1835 = scalar_lea.hbm %s4, %s1834
          %s1836 = sshll.u32 %s1810, 4
          %s1837 = int_to_ptr.vmem [resolvable:$true] %s1836
          %1842 = dma.vmem_to_hbm [thread:$0]  %s1837, 1024, %s1835, %s1807, 128, 128, 8
        $region52: #{tpu_custom_call.1} parent=31 // pred_fallthru
          _
      $region32: #{tpu_custom_call.1} parent=5 // pred_fallthru
        _
      %p1843 = scmp.le.s32.totalorder 2, %s21
      // Predicated region
      $region53: #{tpu_custom_call.1} parent=5 // pred_check
        %p1844 = pneg %p1843
      $region54: #{tpu_custom_call.1} parent=5 // pred_check_branch
        %1846 = sbr.rel (%p1844) target = $region56
      $region55: #{tpu_custom_call.1} parent=5 // pred_region
        %s1847 = ssub.s32 %s21, 2
        // Predicated region
        $region57: #{tpu_custom_call.1} parent=55 // pred_check
          %p1848 = pneg %p118
        $region58: #{tpu_custom_call.1} parent=55 // pred_check_branch
          %1850 = sbr.rel (%p1848) target = $region60
        $region59: #{tpu_custom_call.1} parent=55 // pred_region
          %s1851 = sand.u32 %s103, 1
          %s1852 = scalar_lea.sflag [#allocation6], %s1851
          %s1853 = sand.u32 %s103, 1
          %s1854 = smul.addr %s1853, 64
          %s1855 = scalar_lea.vmem [#allocation10], %s1854
          %1856 = dma.done %s1852, 1024
        $region60: #{tpu_custom_call.1} parent=55 // pred_fallthru
          _
        // Predicated region
        $region61: #{tpu_custom_call.1} parent=55 // pred_check
          %p1857 = pneg %p144
        $region62: #{tpu_custom_call.1} parent=55 // pred_check_branch
          %1859 = sbr.rel (%p1857) target = $region64
        $region63: #{tpu_custom_call.1} parent=55 // pred_region
          %s1860 = sand.u32 %s129, 1
          %s1861 = scalar_lea.sflag [#allocation12], %s1860
          %s1862 = sand.u32 %s129, 1
          %s1863 = smul.addr %s1862, 64
          %s1864 = scalar_lea.vmem [#allocation11], %s1863
          %1865 = dma.done %s1861, 1024
        $region64: #{tpu_custom_call.1} parent=55 // pred_fallthru
          _
      $region56: #{tpu_custom_call.1} parent=5 // pred_fallthru
        _
    $region6: #{tpu_custom_call.1} parent=1 // loop_footer
      %s25 = sadd.s32 1, %s21
    $region7: #{tpu_custom_call.1} parent=1 // loop_footer_branch
      %20 = sbr.rel target = $region3
    $region8: #{tpu_custom_call.1} parent=1 // loop_exit
      _
    %1866 = vsyncpa [#allocation5], 1
    %s1867 = scalar_lea.sflag [#allocation5], 1
    %1868 = vsyncpa %s1867, 1
    %1869 = vsyncpa [#allocation8], 1
    %1870 = vsyncpa [#allocation6], 1
    %s1871 = scalar_lea.sflag [#allocation6], 1
    %1872 = vsyncpa %s1871, 1
    %1873 = vsyncpa [#allocation12], 1
    %s1874 = scalar_lea.sflag [#allocation12], 1
    %1875 = vsyncpa %s1874, 1

</llo_original>
